<compile_context>
chip_gen: v5e
topology: v5e:2x2
jax: 0.10.0
libtpu: 0.0.40
codegen_flags: <defaults>
</compile_context>

<pallas_src>
import functools
import math

import jax
import jax.numpy as jnp
from jax import lax
from jax.experimental import pallas as pl
from jax.experimental.pallas import tpu as pltpu


# ---------------------------------------------------------------------------
# VMEM-aware sizing helpers
# ---------------------------------------------------------------------------
@functools.lru_cache(maxsize=1)
def _vmem_caps():
    cap = 64 << 20  # conservative default (v7x per-TC VMEM)
    try:
        info = pltpu.get_tpu_info()
        cap = int(getattr(info, "vmem_capacity_bytes", cap))
    except Exception:
        pass
    budget = min(int(cap * 0.5), 80 << 20)   # tile-selection working-set budget
    return cap, budget


def _compiler_params(dim_semantics, vmem_need_bytes, vmem_cap_bytes):
    # Always pass an accurate, generation-clamped limit (review item).
    limit = max(int(vmem_need_bytes) + (8 << 20), 32 << 20)
    limit = min(limit, max(vmem_cap_bytes - (4 << 20), 16 << 20))
    return pltpu.CompilerParams(
        dimension_semantics=dim_semantics, vmem_limit_bytes=int(limit)
    )


_TC_CANDIDATES = (2048, 1536, 1024, 768, 512, 384, 256, 128)


def _pick_tc(C, fixed_bytes, per_col_bytes, budget, prefer_split):
    """Largest lane-dense divisor of C fitting the VMEM budget."""
    divisors = [c for c in _TC_CANDIDATES if c <= C and C % c == 0]
    if prefer_split and len(divisors) > 1 and divisors[0] == C:
        # keep the grid >= 2 steps so both v7x TensorCores get work
        divisors = divisors[1:]
    for c in divisors:
        if fixed_bytes + c * per_col_bytes <= budget:
            return c
    if divisors:
        return divisors[-1]   # TODO(synk): K-tiled reduction instead of shrinking tc
    return C


def _pick_ta(A):
    """Small row tile for the pair kernel; keep the grid >= 2 steps when A >= 2."""
    for cand in (8, 4, 2):
        if A % cand == 0 and A // cand >= 2:
            return cand
    return 1


# ---------------------------------------------------------------------------
# Pallas kernels
# ---------------------------------------------------------------------------
def _mode_product_kernel(x_ref, w_ref, b_ref, o_ref):
    # x_ref: (1, K, tc)   w_ref: (H, K)   b_ref: (H, 1)   o_ref: (1, H, tc)
    acc = lax.dot_general(
        w_ref[...], x_ref[0],
        dimension_numbers=(((1,), (0,)), ((), ())),
        preferred_element_type=jnp.float32,
    )
    o_ref[0] = (acc + b_ref[...].astype(jnp.float32)).astype(o_ref.dtype)


def _pair_kernel_outer(x_ref, wa_ref, ba_ref, wbt_ref, bb_ref, o_ref):
    # transform_outer=True order: contract K1 (second-to-last axis) then K2 (last).
    # x_ref: (ta, K1, K2)  wa: (Ha, K1)  ba: (Ha, 1)  wbt: (K2, Hb)  bb: (1, Hb)
    wa = wa_ref[...]
    wbt = wbt_ref[...]
    ha, k2 = wa.shape[0], wbt.shape[0]
    hb = wbt.shape[1]
    ba = jnp.broadcast_to(ba_ref[...].astype(jnp.float32), (ha, k2))   # hoisted
    bb = jnp.broadcast_to(bb_ref[...].astype(jnp.float32), (ha, hb))   # hoisted
    for j in range(x_ref.shape[0]):
        y1 = lax.dot_general(
            wa, x_ref[j],
            dimension_numbers=(((1,), (0,)), ((), ())),
            preferred_element_type=jnp.float32,
        )                                                   # (Ha, K2)
        y1 = (y1 + ba).astype(wbt.dtype)
        y2 = lax.dot_general(
            y1, wbt,
            dimension_numbers=(((1,), (0,)), ((), ())),
            preferred_element_type=jnp.float32,
        )                                                   # (Ha, Hb)
        o_ref[j] = (y2 + bb).astype(o_ref.dtype)


def _pair_kernel_inner(x_ref, wa_ref, ba_ref, wbt_ref, bb_ref, o_ref):
    # transform_outer=False order: contract K2 (last axis) then K1.
    wa = wa_ref[...]
    wbt = wbt_ref[...]
    ha, k1 = wa.shape[0], wa.shape[1]
    hb = wbt.shape[1]
    bb = jnp.broadcast_to(bb_ref[...].astype(jnp.float32), (k1, hb))   # hoisted
    ba = jnp.broadcast_to(ba_ref[...].astype(jnp.float32), (ha, hb))   # hoisted
    for j in range(x_ref.shape[0]):
        y1 = lax.dot_general(
            x_ref[j], wbt,
            dimension_numbers=(((1,), (0,)), ((), ())),
            preferred_element_type=jnp.float32,
        )                                                   # (K1, Hb)
        y1 = (y1 + bb).astype(wa.dtype)
        y2 = lax.dot_general(
            wa, y1,
            dimension_numbers=(((1,), (0,)), ((), ())),
            preferred_element_type=jnp.float32,
        )                                                   # (Ha, Hb)
        o_ref[j] = (y2 + ba).astype(o_ref.dtype)


def _last_axis_kernel(x_ref, wt_ref, b_ref, o_ref):
    # x_ref: (tm, K)   wt_ref: (K, H) (pre-transposed)   b_ref: (1, H)
    acc = lax.dot_general(
        x_ref[...], wt_ref[...],
        dimension_numbers=(((1,), (0,)), ((), ())),
        preferred_element_type=jnp.float32,
    )
    o_ref[...] = (acc + b_ref[...].astype(jnp.float32)).astype(o_ref.dtype)


# ---------------------------------------------------------------------------
# pallas_call wrappers
# ---------------------------------------------------------------------------
def _mode_product_3d(x3, w, b):
    """y[a, h, c] = sum_k x3[a, k, c] * w[h, k] + b[h];   x3: (A, K, C), C > 1."""
    A, K, C = x3.shape
    H = w.shape[0]
    x_item = x3.dtype.itemsize
    w_item = w.dtype.itemsize
    cap, budget = _vmem_caps()

    fixed = 2 * (H * K * w_item + H * 4)
    per_col = 2 * (K + H) * x_item
    tc = _pick_tc(C, fixed, per_col, budget, prefer_split=(A == 1))
    need = fixed + tc * per_col

    cost = pl.CostEstimate(
        flops=int(2 * A * K * H * C),
        transcendentals=0,
        bytes_accessed=int(x_item * A * C * (K + H) + w_item * H * K + 4 * H),
    )

    return pl.pallas_call(
        _mode_product_kernel,
        out_shape=jax.ShapeDtypeStruct((A, H, C), x3.dtype),
        grid=(A, C // tc),
        in_specs=[
            pl.BlockSpec((1, K, tc), lambda a, c: (a, 0, c)),
            pl.BlockSpec((H, K), lambda a, c: (0, 0)),     # PyTorch layout, no W.T
            pl.BlockSpec((H, 1), lambda a, c: (0, 0)),
        ],
        out_specs=pl.BlockSpec((1, H, tc), lambda a, c: (a, 0, c)),
        compiler_params=_compiler_params(("parallel", "parallel"), need, cap),
        cost_estimate=cost,
    )(x3, w, b.reshape(H, 1))


def _fused_pair_3d(x3, w_a, b_a, w_b, b_b, outer_first):
    """Fused two transforms over the last two tensor axes.  x3: (A, K1, K2)."""
    A, K1, K2 = x3.shape
    Ha, Hb = w_a.shape[0], w_b.shape[0]
    x_item = x3.dtype.itemsize
    w_item = w_a.dtype.itemsize
    cap, _ = _vmem_caps()

    ta = _pick_ta(A)
    need = 2 * ((ta * K1 * K2 + ta * Ha * Hb) * x_item
                + (Ha * K1 + K2 * Hb) * w_item + (Ha + Hb) * 4)

    w_bt = w_b.T  # one-time tiny transpose -> both in-kernel dots are canonical NN
    kernel = _pair_kernel_outer if outer_first else _pair_kernel_inner

    if outer_first:
        flops = 2 * A * (Ha * K1 * K2 + Ha * K2 * Hb)
    else:
        flops = 2 * A * (K1 * K2 * Hb + Ha * K1 * Hb)
    cost = pl.CostEstimate(
        flops=int(flops),
        transcendentals=0,
        bytes_accessed=int(x_item * A * (K1 * K2 + Ha * Hb)
                           + w_item * (Ha * K1 + K2 * Hb) + 4 * (Ha + Hb)),
    )

    return pl.pallas_call(
        kernel,
        out_shape=jax.ShapeDtypeStruct((A, Ha, Hb), x3.dtype),
        grid=(A // ta,),
        in_specs=[
            pl.BlockSpec((ta, K1, K2), lambda a: (a, 0, 0)),
            pl.BlockSpec((Ha, K1), lambda a: (0, 0)),
            pl.BlockSpec((Ha, 1), lambda a: (0, 0)),
            pl.BlockSpec((K2, Hb), lambda a: (0, 0)),
            pl.BlockSpec((1, Hb), lambda a: (0, 0)),
        ],
        out_specs=pl.BlockSpec((ta, Ha, Hb), lambda a: (a, 0, 0)),
        compiler_params=_compiler_params(("parallel",), need, cap),
        cost_estimate=cost,
    )(x3, w_a, b_a.reshape(Ha, 1), w_bt, b_b.reshape(1, Hb))


def _last_axis_2d(x2, w, b):
    """y = x2 @ w.T + b;  only used when there is a single transform (n == 1)."""
    M, K = x2.shape
    H = w.shape[0]
    x_item = x2.dtype.itemsize
    w_item = w.dtype.itemsize
    cap, budget = _vmem_caps()

    fixed = 2 * (K * H * w_item + H * 4)
    per_row = 2 * (K + H) * x_item
    tm = M
    for cand in (2048, 1024, 512, 256, 128, 64, 32, 16, 8):
        if cand <= M and M % cand == 0 and fixed + cand * per_row <= budget:
            if cand == M and M >= 16:
                continue   # keep >= 2 grid steps when the problem allows
            tm = cand
            break
    need = fixed + tm * per_row

    return pl.pallas_call(
        _last_axis_kernel,
        out_shape=jax.ShapeDtypeStruct((M, H), x2.dtype),
        grid=(M // tm,),
        in_specs=[
            pl.BlockSpec((tm, K), lambda i: (i, 0)),
            pl.BlockSpec((K, H), lambda i: (0, 0)),
            pl.BlockSpec((1, H), lambda i: (0, 0)),
        ],
        out_specs=pl.BlockSpec((tm, H), lambda i: (i, 0)),
        compiler_params=_compiler_params(("parallel",), need, cap),
    )(x2, w.T, b.reshape(1, H))


# ---------------------------------------------------------------------------
# layout-collapse helpers (contiguous reshapes only: free for row-major HBM arrays)
# ---------------------------------------------------------------------------
def _apply_mode_product(X, w, b, axis):
    shape = X.shape
    K = shape[axis]
    H = w.shape[0]
    pre, post = shape[:axis], shape[axis + 1:]
    A, C = math.prod(pre), math.prod(post)
    y = _mode_product_3d(X.reshape(A, K, C), w, b)
    return y.reshape(*pre, H, *post)


def _apply_fused_pair(X, w_a, b_a, w_b, b_b, outer_first):
    shape = X.shape
    K1, K2 = shape[-2], shape[-1]
    Ha, Hb = w_a.shape[0], w_b.shape[0]
    A = math.prod(shape[:-2])
    y = _fused_pair_3d(X.reshape(A, K1, K2), w_a, b_a, w_b, b_b, outer_first)
    return y.reshape(*shape[:-2], Ha, Hb)


def _apply_last_axis(X, w, b):
    shape = X.shape
    K = shape[-1]
    H = w.shape[0]
    M = math.prod(shape[:-1])
    y = _last_axis_2d(X.reshape(M, K), w, b)
    return y.reshape(*shape[:-1], H)


# ---------------------------------------------------------------------------
# NdLinear forward (same semantics / operation order as the PyTorch module)
# ---------------------------------------------------------------------------
@functools.partial(jax.jit, static_argnames=("transform_outer", "compute_dtype"))
def nd_linear_forward(X, weights, biases, transform_outer=True, compute_dtype=None):
    """weights[i]: (hidden_size[i], input_dims[i]) (nn.Linear layout),
    biases[i]: (hidden_size[i],)."""
    n = len(weights)
    if compute_dtype is not None:
        X = X.astype(compute_dtype)
        weights = [w.astype(compute_dtype) for w in weights]
    biases = [b.astype(jnp.float32) for b in biases]

    if n == 1:
        return _apply_last_axis(X, weights[0], biases[0])

    if transform_outer:
        # layers 0 .. n-3 along axes 1 .. n-2, then the fused pair (layers n-2, n-1)
        for ax in range(1, n - 1):
            X = _apply_mode_product(X, weights[ax - 1], biases[ax - 1], ax)
        X = _apply_fused_pair(X, weights[n - 2], biases[n - 2],
                              weights[n - 1], biases[n - 1], outer_first=True)
    else:
        # fused pair first (layers n-1, n-2), then layers n-3 .. 0 along axes n-2 .. 1
        X = _apply_fused_pair(X, weights[n - 2], biases[n - 2],
                              weights[n - 1], biases[n - 1], outer_first=False)
        for ax in range(n - 2, 0, -1):
            X = _apply_mode_product(X, weights[ax - 1], biases[ax - 1], ax)
    return X


def nd_linear_ref(X, weights, biases, transform_outer=True):
    """Pure-JAX reference mirroring the PyTorch module exactly."""
    num_transforms = len(weights)
    for i in range(num_transforms):
        if transform_outer:
            layer_idx = i
            transpose_dim = i + 1
        else:
            layer_idx = num_transforms - (i + 1)
            transpose_dim = num_transforms - i
        X = jnp.swapaxes(X, transpose_dim, num_transforms)
        x_size = X.shape[:-1]
        X2 = X.reshape(-1, X.shape[-1])
        X2 = X2 @ weights[layer_idx].T + biases[layer_idx]
        X = X2.reshape(*x_size, X2.shape[-1])
        X = jnp.swapaxes(X, transpose_dim, num_transforms)
    return X


def init_nd_linear_params(key, input_dims, hidden_size):
    """Deterministic init matching nn.Linear's default (uniform +-1/sqrt(fan_in))."""
    weights, biases = [], []
    for i in range(len(input_dims)):
        key, kw, kb = jax.random.split(key, 3)
        bound = 1.0 / math.sqrt(float(input_dims[i]))
        W = jax.random.uniform(kw, (hidden_size[i], input_dims[i]),
                               minval=-bound, maxval=bound, dtype=jnp.float32)
        b = jax.random.uniform(kb, (hidden_size[i],),
                               minval=-bound, maxval=bound, dtype=jnp.float32)
        weights.append(W)
        biases.append(b)
    return weights, biases


if __name__ == "__main__":
    batch = 2
    input_dims = (4, 16, 32)
    hidden_size = (8, 16, 16)

    key = jax.random.PRNGKey(0)
    key, kx = jax.random.split(key)
    x = jax.random.normal(kx, (batch,) + input_dims, dtype=jnp.float32)
    weights, biases = init_nd_linear_params(key, input_dims, hidden_size)

    for to in (True, False):
        out = nd_linear_forward(x, weights, biases, transform_outer=to)
        out = jax.block_until_ready(out)
        ref = nd_linear_ref(x, weights, biases, transform_outer=to)
        assert out.shape == (batch,) + hidden_size, out.shape
        assert jnp.allclose(out, ref, atol=1e-4, rtol=1e-4), f"mismatch (transform_outer={to})"

    # bf16 activations/weights with f32 MXU accumulation (memory-bound win).
    out_bf16 = nd_linear_forward(x, weights, biases, transform_outer=True,
                                 compute_dtype=jnp.bfloat16)
    out_bf16 = jax.block_until_ready(out_bf16)
    ref = nd_linear_ref(x, weights, biases, transform_outer=True)
    assert out_bf16.shape == (batch,) + hidden_size
    assert jnp.allclose(out_bf16.astype(jnp.float32), ref, atol=5e-2, rtol=5e-2), "bf16 mismatch"

    print("KERNEL_OK")
</pallas_src>

<mosaic_0001>
module attributes {stable_mosaic.version = 11 : i64} {
  func.func @_mode_product_kernel(%arg0: i32, %arg1: i32, %arg2: memref<1x4x512xf32, #tpu.memory_space<vmem>>, %arg3: memref<8x4xf32, #tpu.memory_space<vmem>>, %arg4: memref<8x1xf32, #tpu.memory_space<vmem>>, %arg5: memref<1x8x512xf32, #tpu.memory_space<vmem>>) attributes {dimension_semantics = [#tpu.dimension_semantics<parallel>, #tpu.dimension_semantics<parallel>], iteration_bounds = array<i64: 2, 1>, scalar_prefetch = 0 : i64, scratch_operands = 0 : i64, tpu.core_type = #tpu.core_type<tc>, window_params = [{transform_indices = @transform_0, window_bounds = array<i64: 1, 4, 512>}, {pipeline_mode = #tpu.pipeline_mode<synchronous>, transform_indices = @transform_1, window_bounds = array<i64: 8, 4>}, {pipeline_mode = #tpu.pipeline_mode<synchronous>, transform_indices = @transform_2, window_bounds = array<i64: 8, 1>}, {transform_indices = @transform_3, window_bounds = array<i64: 1, 8, 512>}]} {
    %c0 = arith.constant 0 : index
    %c0_0 = arith.constant 0 : index
    %0 = vector.load %arg3[%c0, %c0_0] : memref<8x4xf32, #tpu.memory_space<vmem>>, vector<8x4xf32>
    %c0_1 = arith.constant 0 : index
    %c0_2 = arith.constant 0 : index
    %c0_3 = arith.constant 0 : index
    %1 = vector.load %arg2[%c0_1, %c0_2, %c0_3] : memref<1x4x512xf32, #tpu.memory_space<vmem>>, vector<1x4x512xf32>
    %2 = vector.shape_cast %1 : vector<1x4x512xf32> to vector<4x512xf32>
    %cst = arith.constant dense<0.000000e+00> : vector<8x512xf32>
    %3 = tpu.matmul %0, %2, %cst {dimension_numbers = #tpu.dot_dimension_numbers<[1], [0], [0], [1], [0, 0, 1, 1], [], []>} : vector<8x4xf32>, vector<4x512xf32>, vector<8x512xf32> -> vector<8x512xf32>
    %c0_4 = arith.constant 0 : index
    %c0_5 = arith.constant 0 : index
    %4 = vector.load %arg4[%c0_4, %c0_5] : memref<8x1xf32, #tpu.memory_space<vmem>>, vector<8x1xf32>
    %5 = vector.broadcast %4 : vector<8x1xf32> to vector<8x512xf32>
    %6 = arith.addf %3, %5 : vector<8x512xf32>
    %c0_6 = arith.constant 0 : index
    %c0_7 = arith.constant 0 : index
    %c0_8 = arith.constant 0 : index
    %7 = vector.load %arg5[%c0_6, %c0_7, %c0_8] : memref<1x8x512xf32, #tpu.memory_space<vmem>>, vector<1x8x512xf32>
    %8 = vector.shape_cast %7 : vector<1x8x512xf32> to vector<8x512xf32>
    %9 = vector.shape_cast %6 : vector<8x512xf32> to vector<1x8x512xf32>
    tpu.vector_store %arg5[%c0_6, %c0_7, %c0_8], %9 {strides = array<i32>} : memref<1x8x512xf32, #tpu.memory_space<vmem>>, vector<1x8x512xf32>,
    return
  }
  func.func @transform_0(%arg0: i32, %arg1: i32) -> (i32, i32, i32) {
    %c0_i32 = arith.constant 0 : i32
    %c0_i32_0 = arith.constant 0 : i32
    return %arg0, %c0_i32, %arg1 : i32, i32, i32
  }
  func.func @transform_1(%arg0: i32, %arg1: i32) -> (i32, i32) {
    %c0_i32 = arith.constant 0 : i32
    %c0_i32_0 = arith.constant 0 : i32
    %c0_i32_1 = arith.constant 0 : i32
    return %c0_i32, %c0_i32_0 : i32, i32
  }
  func.func @transform_2(%arg0: i32, %arg1: i32) -> (i32, i32) {
    %c0_i32 = arith.constant 0 : i32
    %c0_i32_0 = arith.constant 0 : i32
    %c0_i32_1 = arith.constant 0 : i32
    return %c0_i32, %c0_i32_0 : i32, i32
  }
  func.func @transform_3(%arg0: i32, %arg1: i32) -> (i32, i32, i32) {
    %c0_i32 = arith.constant 0 : i32
    %c0_i32_0 = arith.constant 0 : i32
    return %arg0, %c0_i32, %arg1 : i32, i32, i32
  }
}

module attributes {stable_mosaic.version = 11 : i64} {
  func.func @_pair_kernel_outer(%arg0: i32, %arg1: memref<8x16x32xf32, #tpu.memory_space<vmem>>, %arg2: memref<16x16xf32, #tpu.memory_space<vmem>>, %arg3: memref<16x1xf32, #tpu.memory_space<vmem>>, %arg4: memref<32x16xf32, #tpu.memory_space<vmem>>, %arg5: memref<1x16xf32, #tpu.memory_space<vmem>>, %arg6: memref<8x16x16xf32, #tpu.memory_space<vmem>>) attributes {dimension_semantics = [#tpu.dimension_semantics<parallel>], iteration_bounds = array<i64: 2>, scalar_prefetch = 0 : i64, scratch_operands = 0 : i64, tpu.core_type = #tpu.core_type<tc>, window_params = [{transform_indices = @transform_0, window_bounds = array<i64: 8, 16, 32>}, {pipeline_mode = #tpu.pipeline_mode<synchronous>, transform_indices = @transform_1, window_bounds = array<i64: 16, 16>}, {pipeline_mode = #tpu.pipeline_mode<synchronous>, transform_indices = @transform_2, window_bounds = array<i64: 16, 1>}, {pipeline_mode = #tpu.pipeline_mode<synchronous>, transform_indices = @transform_3, window_bounds = array<i64: 32, 16>}, {pipeline_mode = #tpu.pipeline_mode<synchronous>, transform_indices = @transform_4, window_bounds = array<i64: 1, 16>}, {transform_indices = @transform_5, window_bounds = array<i64: 8, 16, 16>}]} {
    %c0 = arith.constant 0 : index
    %c0_0 = arith.constant 0 : index
    %0 = vector.load %arg2[%c0, %c0_0] : memref<16x16xf32, #tpu.memory_space<vmem>>, vector<16x16xf32>
    %c0_1 = arith.constant 0 : index
    %c0_2 = arith.constant 0 : index
    %1 = vector.load %arg4[%c0_1, %c0_2] : memref<32x16xf32, #tpu.memory_space<vmem>>, vector<32x16xf32>
    %c0_3 = arith.constant 0 : index
    %c0_4 = arith.constant 0 : index
    %2 = vector.load %arg3[%c0_3, %c0_4] : memref<16x1xf32, #tpu.memory_space<vmem>>, vector<16x1xf32>
    %3 = vector.shape_cast %2 : vector<16x1xf32> to vector<16x1xf32>
    %4 = vector.broadcast %3 : vector<16x1xf32> to vector<16x32xf32>
    %c0_5 = arith.constant 0 : index
    %c0_6 = arith.constant 0 : index
    %5 = vector.load %arg5[%c0_5, %c0_6] : memref<1x16xf32, #tpu.memory_space<vmem>>, vector<1x16xf32>
    %6 = vector.shape_cast %5 : vector<1x16xf32> to vector<1x16xf32>
    %7 = vector.broadcast %6 : vector<1x16xf32> to vector<16x16xf32>
    %c0_7 = arith.constant 0 : index
    %c0_8 = arith.constant 0 : index
    %c0_9 = arith.constant 0 : index
    %8 = vector.load %arg1[%c0_7, %c0_8, %c0_9] : memref<8x16x32xf32, #tpu.memory_space<vmem>>, vector<1x16x32xf32>
    %9 = vector.shape_cast %8 : vector<1x16x32xf32> to vector<16x32xf32>
    %cst = arith.constant dense<0.000000e+00> : vector<16x32xf32>
    %10 = tpu.matmul %0, %9, %cst {dimension_numbers = #tpu.dot_dimension_numbers<[1], [0], [0], [1], [0, 0, 1, 1], [], []>} : vector<16x16xf32>, vector<16x32xf32>, vector<16x32xf32> -> vector<16x32xf32>
    %11 = arith.addf %10, %4 : vector<16x32xf32>
    %cst_10 = arith.constant dense<0.000000e+00> : vector<16x16xf32>
    %12 = tpu.matmul %11, %1, %cst_10 {dimension_numbers = #tpu.dot_dimension_numbers<[1], [0], [0], [1], [0, 0, 1, 1], [], []>} : vector<16x32xf32>, vector<32x16xf32>, vector<16x16xf32> -> vector<16x16xf32>
    %13 = arith.addf %12, %7 : vector<16x16xf32>
    %c0_11 = arith.constant 0 : index
    %c0_12 = arith.constant 0 : index
    %c0_13 = arith.constant 0 : index
    %14 = vector.load %arg6[%c0_11, %c0_12, %c0_13] : memref<8x16x16xf32, #tpu.memory_space<vmem>>, vector<1x16x16xf32>
    %15 = vector.shape_cast %14 : vector<1x16x16xf32> to vector<16x16xf32>
    %16 = vector.shape_cast %13 : vector<16x16xf32> to vector<1x16x16xf32>
    tpu.vector_store %arg6[%c0_11, %c0_12, %c0_13], %16 {strides = array<i32>} : memref<8x16x16xf32, #tpu.memory_space<vmem>>, vector<1x16x16xf32>,
    %c1 = arith.constant 1 : index
    %c0_14 = arith.constant 0 : index
    %c0_15 = arith.constant 0 : index
    %17 = vector.load %arg1[%c1, %c0_14, %c0_15] : memref<8x16x32xf32, #tpu.memory_space<vmem>>, vector<1x16x32xf32>
    %18 = vector.shape_cast %17 : vector<1x16x32xf32> to vector<16x32xf32>
    %cst_16 = arith.constant dense<0.000000e+00> : vector<16x32xf32>
    %19 = tpu.matmul %0, %18, %cst_16 {dimension_numbers = #tpu.dot_dimension_numbers<[1], [0], [0], [1], [0, 0, 1, 1], [], []>} : vector<16x16xf32>, vector<16x32xf32>, vector<16x32xf32> -> vector<16x32xf32>
    %20 = arith.addf %19, %4 : vector<16x32xf32>
    %cst_17 = arith.constant dense<0.000000e+00> : vector<16x16xf32>
    %21 = tpu.matmul %20, %1, %cst_17 {dimension_numbers = #tpu.dot_dimension_numbers<[1], [0], [0], [1], [0, 0, 1, 1], [], []>} : vector<16x32xf32>, vector<32x16xf32>, vector<16x16xf32> -> vector<16x16xf32>
    %22 = arith.addf %21, %7 : vector<16x16xf32>
    %c1_18 = arith.constant 1 : index
    %c0_19 = arith.constant 0 : index
    %c0_20 = arith.constant 0 : index
    %23 = vector.load %arg6[%c1_18, %c0_19, %c0_20] : memref<8x16x16xf32, #tpu.memory_space<vmem>>, vector<1x16x16xf32>
    %24 = vector.shape_cast %23 : vector<1x16x16xf32> to vector<16x16xf32>
    %25 = vector.shape_cast %22 : vector<16x16xf32> to vector<1x16x16xf32>
    tpu.vector_store %arg6[%c1_18, %c0_19, %c0_20], %25 {strides = array<i32>} : memref<8x16x16xf32, #tpu.memory_space<vmem>>, vector<1x16x16xf32>,
    %c2 = arith.constant 2 : index
    %c0_21 = arith.constant 0 : index
    %c0_22 = arith.constant 0 : index
    %26 = vector.load %arg1[%c2, %c0_21, %c0_22] : memref<8x16x32xf32, #tpu.memory_space<vmem>>, vector<1x16x32xf32>
    %27 = vector.shape_cast %26 : vector<1x16x32xf32> to vector<16x32xf32>
    %cst_23 = arith.constant dense<0.000000e+00> : vector<16x32xf32>
    %28 = tpu.matmul %0, %27, %cst_23 {dimension_numbers = #tpu.dot_dimension_numbers<[1], [0], [0], [1], [0, 0, 1, 1], [], []>} : vector<16x16xf32>, vector<16x32xf32>, vector<16x32xf32> -> vector<16x32xf32>
    %29 = arith.addf %28, %4 : vector<16x32xf32>
    %cst_24 = arith.constant dense<0.000000e+00> : vector<16x16xf32>
    %30 = tpu.matmul %29, %1, %cst_24 {dimension_numbers = #tpu.dot_dimension_numbers<[1], [0], [0], [1], [0, 0, 1, 1], [], []>} : vector<16x32xf32>, vector<32x16xf32>, vector<16x16xf32> -> vector<16x16xf32>
    %31 = arith.addf %30, %7 : vector<16x16xf32>
    %c2_25 = arith.constant 2 : index
    %c0_26 = arith.constant 0 : index
    %c0_27 = arith.constant 0 : index
    %32 = vector.load %arg6[%c2_25, %c0_26, %c0_27] : memref<8x16x16xf32, #tpu.memory_space<vmem>>, vector<1x16x16xf32>
    %33 = vector.shape_cast %32 : vector<1x16x16xf32> to vector<16x16xf32>
    %34 = vector.shape_cast %31 : vector<16x16xf32> to vector<1x16x16xf32>
    tpu.vector_store %arg6[%c2_25, %c0_26, %c0_27], %34 {strides = array<i32>} : memref<8x16x16xf32, #tpu.memory_space<vmem>>, vector<1x16x16xf32>,
    %c3 = arith.constant 3 : index
    %c0_28 = arith.constant 0 : index
    %c0_29 = arith.constant 0 : index
    %35 = vector.load %arg1[%c3, %c0_28, %c0_29] : memref<8x16x32xf32, #tpu.memory_space<vmem>>, vector<1x16x32xf32>
    %36 = vector.shape_cast %35 : vector<1x16x32xf32> to vector<16x32xf32>
    %cst_30 = arith.constant dense<0.000000e+00> : vector<16x32xf32>
    %37 = tpu.matmul %0, %36, %cst_30 {dimension_numbers = #tpu.dot_dimension_numbers<[1], [0], [0], [1], [0, 0, 1, 1], [], []>} : vector<16x16xf32>, vector<16x32xf32>, vector<16x32xf32> -> vector<16x32xf32>
    %38 = arith.addf %37, %4 : vector<16x32xf32>
    %cst_31 = arith.constant dense<0.000000e+00> : vector<16x16xf32>
    %39 = tpu.matmul %38, %1, %cst_31 {dimension_numbers = #tpu.dot_dimension_numbers<[1], [0], [0], [1], [0, 0, 1, 1], [], []>} : vector<16x32xf32>, vector<32x16xf32>, vector<16x16xf32> -> vector<16x16xf32>
    %40 = arith.addf %39, %7 : vector<16x16xf32>
    %c3_32 = arith.constant 3 : index
    %c0_33 = arith.constant 0 : index
    %c0_34 = arith.constant 0 : index
    %41 = vector.load %arg6[%c3_32, %c0_33, %c0_34] : memref<8x16x16xf32, #tpu.memory_space<vmem>>, vector<1x16x16xf32>
    %42 = vector.shape_cast %41 : vector<1x16x16xf32> to vector<16x16xf32>
    %43 = vector.shape_cast %40 : vector<16x16xf32> to vector<1x16x16xf32>
    tpu.vector_store %arg6[%c3_32, %c0_33, %c0_34], %43 {strides = array<i32>} : memref<8x16x16xf32, #tpu.memory_space<vmem>>, vector<1x16x16xf32>,
    %c4 = arith.constant 4 : index
    %c0_35 = arith.constant 0 : index
    %c0_36 = arith.constant 0 : index
    %44 = vector.load %arg1[%c4, %c0_35, %c0_36] : memref<8x16x32xf32, #tpu.memory_space<vmem>>, vector<1x16x32xf32>
    %45 = vector.shape_cast %44 : vector<1x16x32xf32> to vector<16x32xf32>
    %cst_37 = arith.constant dense<0.000000e+00> : vector<16x32xf32>
    %46 = tpu.matmul %0, %45, %cst_37 {dimension_numbers = #tpu.dot_dimension_numbers<[1], [0], [0], [1], [0, 0, 1, 1], [], []>} : vector<16x16xf32>, vector<16x32xf32>, vector<16x32xf32> -> vector<16x32xf32>
    %47 = arith.addf %46, %4 : vector<16x32xf32>
    %cst_38 = arith.constant dense<0.000000e+00> : vector<16x16xf32>
    %48 = tpu.matmul %47, %1, %cst_38 {dimension_numbers = #tpu.dot_dimension_numbers<[1], [0], [0], [1], [0, 0, 1, 1], [], []>} : vector<16x32xf32>, vector<32x16xf32>, vector<16x16xf32> -> vector<16x16xf32>
    %49 = arith.addf %48, %7 : vector<16x16xf32>
    %c4_39 = arith.constant 4 : index
    %c0_40 = arith.constant 0 : index
    %c0_41 = arith.constant 0 : index
    %50 = vector.load %arg6[%c4_39, %c0_40, %c0_41] : memref<8x16x16xf32, #tpu.memory_space<vmem>>, vector<1x16x16xf32>
    %51 = vector.shape_cast %50 : vector<1x16x16xf32> to vector<16x16xf32>
    %52 = vector.shape_cast %49 : vector<16x16xf32> to vector<1x16x16xf32>
    tpu.vector_store %arg6[%c4_39, %c0_40, %c0_41], %52 {strides = array<i32>} : memref<8x16x16xf32, #tpu.memory_space<vmem>>, vector<1x16x16xf32>,
    %c5 = arith.constant 5 : index
    %c0_42 = arith.constant 0 : index
    %c0_43 = arith.constant 0 : index
    %53 = vector.load %arg1[%c5, %c0_42, %c0_43] : memref<8x16x32xf32, #tpu.memory_space<vmem>>, vector<1x16x32xf32>
    %54 = vector.shape_cast %53 : vector<1x16x32xf32> to vector<16x32xf32>
    %cst_44 = arith.constant dense<0.000000e+00> : vector<16x32xf32>
    %55 = tpu.matmul %0, %54, %cst_44 {dimension_numbers = #tpu.dot_dimension_numbers<[1], [0], [0], [1], [0, 0, 1, 1], [], []>} : vector<16x16xf32>, vector<16x32xf32>, vector<16x32xf32> -> vector<16x32xf32>
    %56 = arith.addf %55, %4 : vector<16x32xf32>
    %cst_45 = arith.constant dense<0.000000e+00> : vector<16x16xf32>
    %57 = tpu.matmul %56, %1, %cst_45 {dimension_numbers = #tpu.dot_dimension_numbers<[1], [0], [0], [1], [0, 0, 1, 1], [], []>} : vector<16x32xf32>, vector<32x16xf32>, vector<16x16xf32> -> vector<16x16xf32>
    %58 = arith.addf %57, %7 : vector<16x16xf32>
    %c5_46 = arith.constant 5 : index
    %c0_47 = arith.constant 0 : index
    %c0_48 = arith.constant 0 : index
    %59 = vector.load %arg6[%c5_46, %c0_47, %c0_48] : memref<8x16x16xf32, #tpu.memory_space<vmem>>, vector<1x16x16xf32>
    %60 = vector.shape_cast %59 : vector<1x16x16xf32> to vector<16x16xf32>
    %61 = vector.shape_cast %58 : vector<16x16xf32> to vector<1x16x16xf32>
    tpu.vector_store %arg6[%c5_46, %c0_47, %c0_48], %61 {strides = array<i32>} : memref<8x16x16xf32, #tpu.memory_space<vmem>>, vector<1x16x16xf32>,
    %c6 = arith.constant 6 : index
    %c0_49 = arith.constant 0 : index
    %c0_50 = arith.constant 0 : index
    %62 = vector.load %arg1[%c6, %c0_49, %c0_50] : memref<8x16x32xf32, #tpu.memory_space<vmem>>, vector<1x16x32xf32>
    %63 = vector.shape_cast %62 : vector<1x16x32xf32> to vector<16x32xf32>
    %cst_51 = arith.constant dense<0.000000e+00> : vector<16x32xf32>
    %64 = tpu.matmul %0, %63, %cst_51 {dimension_numbers = #tpu.dot_dimension_numbers<[1], [0], [0], [1], [0, 0, 1, 1], [], []>} : vector<16x16xf32>, vector<16x32xf32>, vector<16x32xf32> -> vector<16x32xf32>
    %65 = arith.addf %64, %4 : vector<16x32xf32>
    %cst_52 = arith.constant dense<0.000000e+00> : vector<16x16xf32>
    %66 = tpu.matmul %65, %1, %cst_52 {dimension_numbers = #tpu.dot_dimension_numbers<[1], [0], [0], [1], [0, 0, 1, 1], [], []>} : vector<16x32xf32>, vector<32x16xf32>, vector<16x16xf32> -> vector<16x16xf32>
    %67 = arith.addf %66, %7 : vector<16x16xf32>
    %c6_53 = arith.constant 6 : index
    %c0_54 = arith.constant 0 : index
    %c0_55 = arith.constant 0 : index
    %68 = vector.load %arg6[%c6_53, %c0_54, %c0_55] : memref<8x16x16xf32, #tpu.memory_space<vmem>>, vector<1x16x16xf32>
    %69 = vector.shape_cast %68 : vector<1x16x16xf32> to vector<16x16xf32>
    %70 = vector.shape_cast %67 : vector<16x16xf32> to vector<1x16x16xf32>
    tpu.vector_store %arg6[%c6_53, %c0_54, %c0_55], %70 {strides = array<i32>} : memref<8x16x16xf32, #tpu.memory_space<vmem>>, vector<1x16x16xf32>,
    %c7 = arith.constant 7 : index
    %c0_56 = arith.constant 0 : index
    %c0_57 = arith.constant 0 : index
    %71 = vector.load %arg1[%c7, %c0_56, %c0_57] : memref<8x16x32xf32, #tpu.memory_space<vmem>>, vector<1x16x32xf32>
    %72 = vector.shape_cast %71 : vector<1x16x32xf32> to vector<16x32xf32>
    %cst_58 = arith.constant dense<0.000000e+00> : vector<16x32xf32>
    %73 = tpu.matmul %0, %72, %cst_58 {dimension_numbers = #tpu.dot_dimension_numbers<[1], [0], [0], [1], [0, 0, 1, 1], [], []>} : vector<16x16xf32>, vector<16x32xf32>, vector<16x32xf32> -> vector<16x32xf32>
    %74 = arith.addf %73, %4 : vector<16x32xf32>
    %cst_59 = arith.constant dense<0.000000e+00> : vector<16x16xf32>
    %75 = tpu.matmul %74, %1, %cst_59 {dimension_numbers = #tpu.dot_dimension_numbers<[1], [0], [0], [1], [0, 0, 1, 1], [], []>} : vector<16x32xf32>, vector<32x16xf32>, vector<16x16xf32> -> vector<16x16xf32>
    %76 = arith.addf %75, %7 : vector<16x16xf32>
    %c7_60 = arith.constant 7 : index
    %c0_61 = arith.constant 0 : index
    %c0_62 = arith.constant 0 : index
    %77 = vector.load %arg6[%c7_60, %c0_61, %c0_62] : memref<8x16x16xf32, #tpu.memory_space<vmem>>, vector<1x16x16xf32>
    %78 = vector.shape_cast %77 : vector<1x16x16xf32> to vector<16x16xf32>
    %79 = vector.shape_cast %76 : vector<16x16xf32> to vector<1x16x16xf32>
    tpu.vector_store %arg6[%c7_60, %c0_61, %c0_62], %79 {strides = array<i32>} : memref<8x16x16xf32, #tpu.memory_space<vmem>>, vector<1x16x16xf32>,
    return
  }
  func.func @transform_0(%arg0: i32) -> (i32, i32, i32) {
    %c0_i32 = arith.constant 0 : i32
    %c0_i32_0 = arith.constant 0 : i32
    %c0_i32_1 = arith.constant 0 : i32
    return %arg0, %c0_i32, %c0_i32_0 : i32, i32, i32
  }
  func.func @transform_1(%arg0: i32) -> (i32, i32) {
    %c0_i32 = arith.constant 0 : i32
    %c0_i32_0 = arith.constant 0 : i32
    %c0_i32_1 = arith.constant 0 : i32
    return %c0_i32, %c0_i32_0 : i32, i32
  }
  func.func @transform_2(%arg0: i32) -> (i32, i32) {
    %c0_i32 = arith.constant 0 : i32
    %c0_i32_0 = arith.constant 0 : i32
    %c0_i32_1 = arith.constant 0 : i32
    return %c0_i32, %c0_i32_0 : i32, i32
  }
  func.func @transform_3(%arg0: i32) -> (i32, i32) {
    %c0_i32 = arith.constant 0 : i32
    %c0_i32_0 = arith.constant 0 : i32
    %c0_i32_1 = arith.constant 0 : i32
    return %c0_i32, %c0_i32_0 : i32, i32
  }
  func.func @transform_4(%arg0: i32) -> (i32, i32) {
    %c0_i32 = arith.constant 0 : i32
    %c0_i32_0 = arith.constant 0 : i32
    %c0_i32_1 = arith.constant 0 : i32
    return %c0_i32, %c0_i32_0 : i32, i32
  }
  func.func @transform_5(%arg0: i32) -> (i32, i32, i32) {
    %c0_i32 = arith.constant 0 : i32
    %c0_i32_0 = arith.constant 0 : i32
    %c0_i32_1 = arith.constant 0 : i32
    return %arg0, %c0_i32, %c0_i32_0 : i32, i32, i32
  }
}

</mosaic_0001>

<llo_original>
// kernel: nd_linear_forward.2
$region0: #{nd_linear_forward.2}
  #allocation0 [shape = 'u32[]', space=smem, size = 0x4, offset = 0x4, fixed_abs, tag = 'smem constant byte address 0x4 - core index']
  #allocation1 [shape = 'u32[72,128]{1,0:T(1,128)}', space=vmem, size = 0x9000, scoped, tag = 'internal scratch']
  %s0 = inlined_call_operand.vmem [shape: f32[2,4,512], index: 0, kind: input, shape index: {}]
  %s1 = inlined_call_operand.vmem [shape: f32[8,4], index: 1, kind: input, shape index: {}]
  %s2 = inlined_call_operand.vmem [shape: f32[8,1], index: 2, kind: input, shape index: {}]
  %s3 = inlined_call_operand.vmem [shape: f32[2,8,512], index: 3, kind: output, shape index: {}]
  %s4 = sld [smem:[#allocation0]]
  $region45: #{nd_linear_forward.2} parent=0
    _
  %s6 = ssub.s32 1, %s4
  %s7 = scalar_select 0, %s6, %s4
  loop: start=0, step=1, limit=4
  $region2: #{nd_linear_forward.2} parent=0 // loop_pre_header
    _
  $region3: #{nd_linear_forward.2} parent=0 // loop_header
    %s9 = sphi 0, %s13
    %p10 = scmp.ge.s32.totalorder %s9, 4
    %s16 = sphi 0, %s28
    %s17 = sphi 0, %s24
    %s18 = sphi 0, %s16
    %s19 = sphi 0, %s17
    %s20 = sphi 0, %s18
    %s21 = sphi 0, %s19
    %s33 = sphi 0, %s35
    %s36 = sphi 0, %s33
    %s37 = sphi 0, %s36
    %s53 = sphi 0, %s37
    %s57 = sphi 0, %s57
    %s59 = sphi 0, %s57
    %s60 = sphi 0, %s59
    %s74 = sphi 0, %s60
    %s78 = sphi 0, %s78
    %s80 = sphi 0, %s78
    %s81 = sphi 0, %s80
    %s95 = sphi 0, %s81
    %s103 = sphi 0, %s105
    %s106 = sphi 0, %s103
    %s107 = sphi 0, %s106
    %s123 = sphi 0, %s107
  $region4: #{nd_linear_forward.2} parent=0 // loop_header_branch
    %12 = sbr.rel (%p10) target = $region8
  $region5: #{nd_linear_forward.2} parent=0 // loop_body
    %s14 = ssub.s32 %s9, 1
    %s15 = ssub.s32 %s9, 2
    %s22 = sadd.s32 1, %s17
    %p23 = scmp.ge.s32.totalorder %s22, 1
    %s24 = scalar_select %p23, 0, %s22
    %s25 = sadd.s32 1, %s16
    %s26 = scalar_select %p23, %s25, %s16
    %p27 = scmp.ge.s32.totalorder %s26, 2
    %s28 = scalar_select %p27, 0, %s26
    %s29 = ssub.s32 %s16, %s28
    %s30 = ssub.s32 %s17, %s24
    %s31 = sor.u32 %s29, %s30
    %p32 = scmp.eq.s32.totalorder %s31, 0
    %s34 = sadd.s32 %s33, 1
    %s35 = scalar_select %p32, %s33, %s34
    %p38 = pneg %p32
    %p39 = scmp.eq.s32.totalorder %s9, 1
    %p40 = por %p38, %p39
    %p41 = scmp.ne.s32.totalorder %s33, %s36
    %p42 = scmp.eq.s32.totalorder %s9, 0
    %p43 = por %p41, %p42
    %p44 = scmp.ne.s32.totalorder %s33, %s36
    %p45 = scmp.eq.s32.totalorder %s14, 1
    %p46 = por %p44, %p45
    %p47 = scmp.ne.s32.totalorder %s36, %s37
    %p48 = scmp.eq.s32.totalorder %s14, 0
    %p49 = por %p47, %p48
    %p50 = scmp.ne.s32.totalorder %s36, %s37
    %p51 = scmp.eq.s32.totalorder %s15, 1
    %p52 = por %p50, %p51
    %p54 = scmp.ne.s32.totalorder %s37, %s53
    %p55 = scmp.eq.s32.totalorder %s15, 0
    %p56 = por %p54, %p55
    %s58 = sadd.s32 %s57, 1
    %p61 = scmp.eq.s32.totalorder %s9, 1
    %p62 = scmp.ne.s32.totalorder %s57, %s59
    %p63 = scmp.eq.s32.totalorder %s9, 0
    %p64 = por %p62, %p63
    %p65 = scmp.ne.s32.totalorder %s57, %s59
    %p66 = scmp.eq.s32.totalorder %s14, 1
    %p67 = por %p65, %p66
    %p68 = scmp.ne.s32.totalorder %s59, %s60
    %p69 = scmp.eq.s32.totalorder %s14, 0
    %p70 = por %p68, %p69
    %p71 = scmp.ne.s32.totalorder %s59, %s60
    %p72 = scmp.eq.s32.totalorder %s15, 1
    %p73 = por %p71, %p72
    %p75 = scmp.ne.s32.totalorder %s60, %s74
    %p76 = scmp.eq.s32.totalorder %s15, 0
    %p77 = por %p75, %p76
    %s79 = sadd.s32 %s78, 1
    %p82 = scmp.eq.s32.totalorder %s9, 1
    %p83 = scmp.ne.s32.totalorder %s78, %s80
    %p84 = scmp.eq.s32.totalorder %s9, 0
    %p85 = por %p83, %p84
    %p86 = scmp.ne.s32.totalorder %s78, %s80
    %p87 = scmp.eq.s32.totalorder %s14, 1
    %p88 = por %p86, %p87
    %p89 = scmp.ne.s32.totalorder %s80, %s81
    %p90 = scmp.eq.s32.totalorder %s14, 0
    %p91 = por %p89, %p90
    %p92 = scmp.ne.s32.totalorder %s80, %s81
    %p93 = scmp.eq.s32.totalorder %s15, 1
    %p94 = por %p92, %p93
    %p96 = scmp.ne.s32.totalorder %s81, %s95
    %p97 = scmp.eq.s32.totalorder %s15, 0
    %p98 = por %p96, %p97
    %s99 = ssub.s32 %s16, %s28
    %s100 = ssub.s32 %s17, %s24
    %s101 = sor.u32 %s99, %s100
    %p102 = scmp.eq.s32.totalorder %s101, 0
    %s104 = sadd.s32 %s103, 1
    %s105 = scalar_select %p102, %s103, %s104
    %p108 = pneg %p102
    %p109 = scmp.eq.s32.totalorder %s9, 1
    %p110 = por %p108, %p109
    %p111 = scmp.ne.s32.totalorder %s103, %s106
    %p112 = scmp.eq.s32.totalorder %s9, 0
    %p113 = por %p111, %p112
    %p114 = scmp.ne.s32.totalorder %s103, %s106
    %p115 = scmp.eq.s32.totalorder %s14, 1
    %p116 = por %p114, %p115
    %p117 = scmp.ne.s32.totalorder %s106, %s107
    %p118 = scmp.eq.s32.totalorder %s14, 0
    %p119 = por %p117, %p118
    %p120 = scmp.ne.s32.totalorder %s106, %s107
    %p121 = scmp.eq.s32.totalorder %s15, 1
    %p122 = por %p120, %p121
    %p124 = scmp.ne.s32.totalorder %s107, %s123
    %p125 = scmp.eq.s32.totalorder %s15, 0
    %p126 = por %p124, %p125
    %p127 = scmp.le.s32.totalorder 1, %s9
    %p128 = scmp.lt.s32.totalorder %s9, 3
    %p129 = pnand %p127, %p128
    %p130 = pneg %p129
    // Predicated region
    $region9: #{nd_linear_forward.2} parent=5 // pred_check
      _
    $region10: #{nd_linear_forward.2} parent=5 // pred_check_branch
      %132 = sbr.rel (%p129) target = $region12
    $region11: #{nd_linear_forward.2} parent=5 // pred_region
      %s133 = ssub.s32 %s9, 1
      // Predicated region
      $region13: #{nd_linear_forward.2} parent=11 // pred_check
        %p134 = pneg %p70
      $region14: #{nd_linear_forward.2} parent=11 // pred_check_branch
        %136 = sbr.rel (%p134) target = $region16
      $region15: #{nd_linear_forward.2} parent=11 // pred_region
        _
      $region16: #{nd_linear_forward.2} parent=11 // pred_fallthru
        _
      // Predicated region
      $region17: #{nd_linear_forward.2} parent=11 // pred_check
        %p137 = pneg %p91
      $region18: #{nd_linear_forward.2} parent=11 // pred_check_branch
        %139 = sbr.rel (%p137) target = $region20
      $region19: #{nd_linear_forward.2} parent=11 // pred_region
        _
      $region20: #{nd_linear_forward.2} parent=11 // pred_fallthru
        _
    $region12: #{nd_linear_forward.2} parent=5 // pred_fallthru
      _
    %p140 = scmp.lt.s32.totalorder %s9, 2
    // Predicated region
    $region21: #{nd_linear_forward.2} parent=5 // pred_check
      %p141 = pneg %p140
    $region22: #{nd_linear_forward.2} parent=5 // pred_check_branch
      %143 = sbr.rel (%p141) target = $region24
    $region23: #{nd_linear_forward.2} parent=5 // pred_region
      // Predicated region
      $region25: #{nd_linear_forward.2} parent=23 // pred_check
        %p144 = pneg %p43
      $region26: #{nd_linear_forward.2} parent=23 // pred_check_branch
        %146 = sbr.rel (%p144) target = $region28
      $region27: #{nd_linear_forward.2} parent=23 // pred_region
        %s147 = smul.u32 4, %s17
        %p148 = scmp.lt.s32.totalorder %s16, 1
        %s149 = scalar_select %p148, %s16, 1
        %p150 = scmp.lt.s32.totalorder %s147, 3
        %s151 = scalar_select %p150, %s147, 3
        %s152 = smul.addr %s149, 4
        %s153 = sadd.s32 %s151, %s152
        %s154 = smul.addr %s153, 4
        %s155 = scalar_lea.vmem %s0, %s154
        %s156 = smul.u32 4, %s17
      $region28: #{nd_linear_forward.2} parent=23 // pred_fallthru
        _
    $region24: #{nd_linear_forward.2} parent=5 // pred_fallthru
      _
    %p157 = scmp.le.s32.totalorder 1, %s9
    %p158 = scmp.lt.s32.totalorder %s9, 3
    %p159 = pnand %p157, %p158
    %p160 = pneg %p159
    // Predicated region
    $region29: #{nd_linear_forward.2} parent=5 // pred_check
      _
    $region30: #{nd_linear_forward.2} parent=5 // pred_check_branch
      %162 = sbr.rel (%p159) target = $region32
    $region31: #{nd_linear_forward.2} parent=5 // pred_region
      %s163 = ssub.s32 %s9, 1
      %s164 = smul.u32 4, %s19
      %p165 = scmp.lt.s32.totalorder %s18, 1
      %s166 = scalar_select %p165, %s18, 1
      %p167 = scmp.lt.s32.totalorder %s164, 3
      %s168 = scalar_select %p167, %s164, 3
      %s169 = smul.addr %s166, 4
      %s170 = sadd.s32 %s168, %s169
      %s171 = smul.addr %s170, 4
      %s172 = scalar_lea.vmem %s0, %s171
      %p173 = pneg %p49
      %p174 = pneg %p46
      %p175 = pneg %p70
      %p176 = pneg %p67
      %p177 = pneg %p91
      %p178 = pneg %p88
      %p179 = pneg %p119
      %p180 = pneg %p116
      %s181 = smul.u32 4, %s19
      %p182 = scmp.lt.s32.totalorder %s18, 1
      %s183 = scalar_select %p182, %s18, 1
      %p184 = scmp.lt.s32.totalorder %s181, 3
      %s185 = scalar_select %p184, %s181, 3
      %s186 = smul.addr %s183, 4
      %s187 = sadd.s32 %s185, %s186
      %s188 = smul.addr %s187, 8
      %s189 = scalar_lea.vmem %s3, %s188
      %s190 = smul.u32 4, %s19
      %p191 = scmp.lt.s32.totalorder %s18, 1
      %s192 = scalar_select %p191, %s18, 1
      %p193 = scmp.lt.s32.totalorder %s190, 3
      %s194 = scalar_select %p193, %s190, 3
      %s195 = smul.addr %s192, 4
      %s196 = sadd.s32 %s194, %s195
      %s197 = smul.addr %s196, 4
      %s198 = scalar_lea.vmem %s0, %s197
      %s199 = smul.u32 4, %s19
      %s200 = smul.u32 4, %s19
      %p201 = scmp.lt.s32.totalorder %s18, 1
      %s202 = scalar_select %p201, %s18, 1
      %p203 = scmp.lt.s32.totalorder %s200, 3
      %s204 = scalar_select %p203, %s200, 3
      %s205 = smul.addr %s202, 4
      %s206 = sadd.s32 %s204, %s205
      %s207 = smul.addr %s206, 8
      %s208 = scalar_lea.vmem %s3, %s207
      %s209 = smul.u32 4, %s19
      %v210 = vld [vmem:[%s1] sm:$0xff]
      %v211 = vld [vmem:[%s198] sm:$0xff]
      %v212 = vld [vmem:[%s198 + $0x8] sm:$0xff]
      %v213 = vld [vmem:[%s2] sm:$0xff]
      %215 = vset.pattern.permute.xlu0 0
      %216 = vperm.xlu0 %215, %v213
      %v217 = vpop.permute.xlu0 %216
      %221 = vst [vmem:[#allocation1] ss:$2 sm:$0xff] %v211
      %s222 = scalar_lea.vmem [#allocation1], 16
      %223 = vst [vmem:[%s222] ss:$2 sm:$0xff] %v212
      %v224 = vld.sshfl [vmem:[#allocation1] sm:$0xff pattern:$0x75316420]
      %v225 = vld.sshfl [vmem:[#allocation1 + $0x8] sm:$0xff pattern:$0x75316420]
      %v226 = vld.sshfl [vmem:[#allocation1 + $0x10] sm:$0xff pattern:$0x75316420]
      %v227 = vld.sshfl [vmem:[#allocation1 + $0x18] sm:$0xff pattern:$0x75316420]
      %vm228 = vcmask 31744
      %v230 = vsel %vm228, %v210, 0
      %vm232 = vcmask 1043456
      %v233 = vsel %vm232, %v224, 0
      %v235 = vsel %vm232, %v225, 0
      %v237 = vsel %vm232, %v226, 0
      %v239 = vsel %vm232, %v227, 0
      %241 = vmatpush.msra.mxu0 0.0
      %242 = vmatpush.msra.mxu0 0.0
      %243 = vmatpush.msra.mxu0 0.0
      %244 = vmatpush.msra.mxu0 0.0
      %245 = vmatpush.msra.mxu0 0.0
      %246 = vmatpush.msra.mxu0 0.0
      %247 = vmatpush.msra.mxu0 0.0
      %248 = vmatpush.msra.mxu0 0.0
      %249 = vmatpush.msra.mxu0 0.0
      %250 = vmatpush.msra.mxu0 0.0
      %251 = vmatpush.msra.mxu0 0.0
      %252 = vmatpush.msra.mxu0 0.0
      %253 = vmatpush.msra.mxu0 0.0
      %254 = vmatpush.msra.mxu0 0.0
      %255 = vmatpush.msra.mxu0 0.0
      %256 = vmatpush.msra.mxu0 %v233
      %257 = vmatmul.f32.gmra.mxu0 %v230
      %v258 = vpop.f32.mrf.mxu0
      %v259 = vadd.f32 %v217, %v258
      %260 = vdwg.mxu0
      %261 = vmatpush.msra.mxu0 0.0
      %262 = vmatpush.msra.mxu0 0.0
      %263 = vmatpush.msra.mxu0 0.0
      %264 = vmatpush.msra.mxu0 0.0
      %265 = vmatpush.msra.mxu0 0.0
      %266 = vmatpush.msra.mxu0 0.0
      %267 = vmatpush.msra.mxu0 0.0
      %268 = vmatpush.msra.mxu0 0.0
      %269 = vmatpush.msra.mxu0 0.0
      %270 = vmatpush.msra.mxu0 0.0
      %271 = vmatpush.msra.mxu0 0.0
      %272 = vmatpush.msra.mxu0 0.0
      %273 = vmatpush.msra.mxu0 0.0
      %274 = vmatpush.msra.mxu0 0.0
      %275 = vmatpush.msra.mxu0 0.0
      %276 = vmatpush.msra.mxu0 %v235
      %277 = vmatmul.f32.gmra.mxu0 %v230
      %v278 = vpop.f32.mrf.mxu0
      %v279 = vadd.f32 %v217, %v278
      %280 = vdwg.mxu0
      %281 = vmatpush.msra.mxu0 0.0
      %282 = vmatpush.msra.mxu0 0.0
      %283 = vmatpush.msra.mxu0 0.0
      %284 = vmatpush.msra.mxu0 0.0
      %285 = vmatpush.msra.mxu0 0.0
      %286 = vmatpush.msra.mxu0 0.0
      %287 = vmatpush.msra.mxu0 0.0
      %288 = vmatpush.msra.mxu0 0.0
      %289 = vmatpush.msra.mxu0 0.0
      %290 = vmatpush.msra.mxu0 0.0
      %291 = vmatpush.msra.mxu0 0.0
      %292 = vmatpush.msra.mxu0 0.0
      %293 = vmatpush.msra.mxu0 0.0
      %294 = vmatpush.msra.mxu0 0.0
      %295 = vmatpush.msra.mxu0 0.0
      %296 = vmatpush.msra.mxu0 %v237
      %297 = vmatmul.f32.gmra.mxu0 %v230
      %v298 = vpop.f32.mrf.mxu0
      %v299 = vadd.f32 %v217, %v298
      %300 = vdwg.mxu0
      %301 = vmatpush.msra.mxu0 0.0
      %302 = vmatpush.msra.mxu0 0.0
      %303 = vmatpush.msra.mxu0 0.0
      %304 = vmatpush.msra.mxu0 0.0
      %305 = vmatpush.msra.mxu0 0.0
      %306 = vmatpush.msra.mxu0 0.0
      %307 = vmatpush.msra.mxu0 0.0
      %308 = vmatpush.msra.mxu0 0.0
      %309 = vmatpush.msra.mxu0 0.0
      %310 = vmatpush.msra.mxu0 0.0
      %311 = vmatpush.msra.mxu0 0.0
      %312 = vmatpush.msra.mxu0 0.0
      %313 = vmatpush.msra.mxu0 0.0
      %314 = vmatpush.msra.mxu0 0.0
      %315 = vmatpush.msra.mxu0 0.0
      %316 = vmatpush.msra.mxu0 %v239
      %317 = vmatmul.f32.gmra.mxu0 %v230
      %v318 = vpop.f32.mrf.mxu0
      %v319 = vadd.f32 %v217, %v318
      %320 = vdwg.mxu0
      %321 = vst [vmem:[%s208] sm:$0xff] %v259
      %322 = vst [vmem:[%s208 + $0x8] sm:$0xff] %v279
      %323 = vst [vmem:[%s208 + $0x10] sm:$0xff] %v299
      %324 = vst [vmem:[%s208 + $0x18] sm:$0xff] %v319
      %s325 = smul.u32 4, %s19
      %p326 = scmp.lt.s32.totalorder %s18, 1
      %s327 = scalar_select %p326, %s18, 1
      %p328 = scmp.lt.s32.totalorder %s325, 3
      %s329 = scalar_select %p328, %s325, 3
      %s330 = smul.addr %s327, 4
      %s331 = sadd.s32 %s329, %s330
      %s332 = smul.addr %s331, 8
      %s333 = scalar_lea.vmem %s3, %s332
      // Predicated region
      $region33: #{nd_linear_forward.2} parent=31 // pred_check
        %p334 = pneg %p116
      $region34: #{nd_linear_forward.2} parent=31 // pred_check_branch
        %336 = sbr.rel (%p334) target = $region36
      $region35: #{nd_linear_forward.2} parent=31 // pred_region
        %s337 = smul.u32 4, %s19
      $region36: #{nd_linear_forward.2} parent=31 // pred_fallthru
        _
    $region32: #{nd_linear_forward.2} parent=5 // pred_fallthru
      _
    %p338 = scmp.le.s32.totalorder 2, %s9
    // Predicated region
    $region37: #{nd_linear_forward.2} parent=5 // pred_check
      %p339 = pneg %p338
    $region38: #{nd_linear_forward.2} parent=5 // pred_check_branch
      %341 = sbr.rel (%p339) target = $region40
    $region39: #{nd_linear_forward.2} parent=5 // pred_region
      %s342 = ssub.s32 %s9, 2
      // Predicated region
      $region41: #{nd_linear_forward.2} parent=39 // pred_check
        %p343 = pneg %p122
      $region42: #{nd_linear_forward.2} parent=39 // pred_check_branch
        %345 = sbr.rel (%p343) target = $region44
      $region43: #{nd_linear_forward.2} parent=39 // pred_region
        %s346 = smul.u32 4, %s21
        %p347 = scmp.lt.s32.totalorder %s20, 1
        %s348 = scalar_select %p347, %s20, 1
        %p349 = scmp.lt.s32.totalorder %s346, 3
        %s350 = scalar_select %p349, %s346, 3
        %s351 = smul.addr %s348, 4
        %s352 = sadd.s32 %s350, %s351
        %s353 = smul.addr %s352, 8
        %s354 = scalar_lea.vmem %s3, %s353
      $region44: #{nd_linear_forward.2} parent=39 // pred_fallthru
        _
    $region40: #{nd_linear_forward.2} parent=5 // pred_fallthru
      _
  $region6: #{nd_linear_forward.2} parent=0 // loop_footer
    %s13 = sadd.s32 1, %s9
  $region7: #{nd_linear_forward.2} parent=0 // loop_footer_branch
    %8 = sbr.rel target = $region3
  $region8: #{nd_linear_forward.2} parent=0 // loop_exit
    _

// kernel: nd_linear_forward.3
$region0: #{nd_linear_forward.3}
  #allocation0 [shape = 'u32[]', space=smem, size = 0x4, offset = 0x4, fixed_abs, tag = 'smem constant byte address 0x4 - core index']
  #allocation1 [shape = 'u32[72,128]{1,0:T(1,128)}', space=vmem, size = 0x9000, scoped, tag = 'internal scratch']
  %s0 = inlined_call_operand.vmem [shape: f32[16,16,32], index: 0, kind: input, shape index: {}]
  %s1 = inlined_call_operand.vmem [shape: f32[16,16], index: 1, kind: input, shape index: {}]
  %s2 = inlined_call_operand.vmem [shape: f32[16,1], index: 2, kind: input, shape index: {}]
  %s3 = inlined_call_operand.vmem [shape: f32[32,16], index: 3, kind: input, shape index: {}]
  %s4 = inlined_call_operand.vmem [shape: f32[1,16], index: 4, kind: input, shape index: {}]
  %s5 = inlined_call_operand.hbm [shape: f32[16,16,16], index: 5, kind: output, shape index: {}]
  %s6 = sld [smem:[#allocation0]]
  $region53: #{nd_linear_forward.3} parent=0
    _
  %s8 = ssub.s32 1, %s6
  %s9 = scalar_select 0, %s8, %s6
  $region1: #{nd_linear_forward.3} parent=0
    #allocation2 [shape = 'u8[131072]{0}', space=vmem, size = 0x20000, scoped, tag = 'output window, operand 0']
    #allocation3 [shape = 's32[2]{0}', space=sflag, size = 0x8, scoped, tag = 'scoped memory for nd_linear_forward.3']
    %10 = vsyncpa [#allocation3], 0
    %s11 = scalar_lea.sflag [#allocation3], 1
    %12 = vsyncpa %s11, 0
    loop: start=0, step=1, limit=4
    $region2: #{nd_linear_forward.3} parent=1 // loop_pre_header
      _
    $region3: #{nd_linear_forward.3} parent=1 // loop_header
      %s14 = sphi 0, %s18
      %p15 = scmp.ge.s32.totalorder %s14, 4
      %s24 = sphi 0, %s26
      %s27 = sphi 0, %s24
      %s28 = sphi 0, %s27
      %s44 = sphi 0, %s28
      %s48 = sphi 0, %s48
      %s50 = sphi 0, %s48
      %s51 = sphi 0, %s50
      %s65 = sphi 0, %s51
      %s69 = sphi 0, %s69
      %s71 = sphi 0, %s69
      %s72 = sphi 0, %s71
      %s86 = sphi 0, %s72
      %s90 = sphi 0, %s90
      %s92 = sphi 0, %s90
      %s93 = sphi 0, %s92
      %s107 = sphi 0, %s93
      %s111 = sphi 0, %s111
      %s113 = sphi 0, %s111
      %s114 = sphi 0, %s113
      %s128 = sphi 0, %s114
      %s134 = sphi 0, %s136
      %s137 = sphi 0, %s134
      %s138 = sphi 0, %s137
      %s154 = sphi 0, %s138
    $region4: #{nd_linear_forward.3} parent=1 // loop_header_branch
      %17 = sbr.rel (%p15) target = $region8
    $region5: #{nd_linear_forward.3} parent=1 // loop_body
      %s19 = ssub.s32 %s14, 1
      %s20 = ssub.s32 %s14, 2
      %s21 = sadd.s32 %s14, 1
      %s22 = ssub.s32 %s14, %s21
      %p23 = scmp.eq.s32.totalorder %s22, 0
      %s25 = sadd.s32 %s24, 1
      %s26 = scalar_select %p23, %s24, %s25
      %p29 = pneg %p23
      %p30 = scmp.eq.s32.totalorder %s14, 1
      %p31 = por %p29, %p30
      %p32 = scmp.ne.s32.totalorder %s24, %s27
      %p33 = scmp.eq.s32.totalorder %s14, 0
      %p34 = por %p32, %p33
      %p35 = scmp.ne.s32.totalorder %s24, %s27
      %p36 = scmp.eq.s32.totalorder %s19, 1
      %p37 = por %p35, %p36
      %p38 = scmp.ne.s32.totalorder %s27, %s28
      %p39 = scmp.eq.s32.totalorder %s19, 0
      %p40 = por %p38, %p39
      %p41 = scmp.ne.s32.totalorder %s27, %s28
      %p42 = scmp.eq.s32.totalorder %s20, 1
      %p43 = por %p41, %p42
      %p45 = scmp.ne.s32.totalorder %s28, %s44
      %p46 = scmp.eq.s32.totalorder %s20, 0
      %p47 = por %p45, %p46
      %s49 = sadd.s32 %s48, 1
      %p52 = scmp.eq.s32.totalorder %s14, 1
      %p53 = scmp.ne.s32.totalorder %s48, %s50
      %p54 = scmp.eq.s32.totalorder %s14, 0
      %p55 = por %p53, %p54
      %p56 = scmp.ne.s32.totalorder %s48, %s50
      %p57 = scmp.eq.s32.totalorder %s19, 1
      %p58 = por %p56, %p57
      %p59 = scmp.ne.s32.totalorder %s50, %s51
      %p60 = scmp.eq.s32.totalorder %s19, 0
      %p61 = por %p59, %p60
      %p62 = scmp.ne.s32.totalorder %s50, %s51
      %p63 = scmp.eq.s32.totalorder %s20, 1
      %p64 = por %p62, %p63
      %p66 = scmp.ne.s32.totalorder %s51, %s65
      %p67 = scmp.eq.s32.totalorder %s20, 0
      %p68 = por %p66, %p67
      %s70 = sadd.s32 %s69, 1
      %p73 = scmp.eq.s32.totalorder %s14, 1
      %p74 = scmp.ne.s32.totalorder %s69, %s71
      %p75 = scmp.eq.s32.totalorder %s14, 0
      %p76 = por %p74, %p75
      %p77 = scmp.ne.s32.totalorder %s69, %s71
      %p78 = scmp.eq.s32.totalorder %s19, 1
      %p79 = por %p77, %p78
      %p80 = scmp.ne.s32.totalorder %s71, %s72
      %p81 = scmp.eq.s32.totalorder %s19, 0
      %p82 = por %p80, %p81
      %p83 = scmp.ne.s32.totalorder %s71, %s72
      %p84 = scmp.eq.s32.totalorder %s20, 1
      %p85 = por %p83, %p84
      %p87 = scmp.ne.s32.totalorder %s72, %s86
      %p88 = scmp.eq.s32.totalorder %s20, 0
      %p89 = por %p87, %p88
      %s91 = sadd.s32 %s90, 1
      %p94 = scmp.eq.s32.totalorder %s14, 1
      %p95 = scmp.ne.s32.totalorder %s90, %s92
      %p96 = scmp.eq.s32.totalorder %s14, 0
      %p97 = por %p95, %p96
      %p98 = scmp.ne.s32.totalorder %s90, %s92
      %p99 = scmp.eq.s32.totalorder %s19, 1
      %p100 = por %p98, %p99
      %p101 = scmp.ne.s32.totalorder %s92, %s93
      %p102 = scmp.eq.s32.totalorder %s19, 0
      %p103 = por %p101, %p102
      %p104 = scmp.ne.s32.totalorder %s92, %s93
      %p105 = scmp.eq.s32.totalorder %s20, 1
      %p106 = por %p104, %p105
      %p108 = scmp.ne.s32.totalorder %s93, %s107
      %p109 = scmp.eq.s32.totalorder %s20, 0
      %p110 = por %p108, %p109
      %s112 = sadd.s32 %s111, 1
      %p115 = scmp.eq.s32.totalorder %s14, 1
      %p116 = scmp.ne.s32.totalorder %s111, %s113
      %p117 = scmp.eq.s32.totalorder %s14, 0
      %p118 = por %p116, %p117
      %p119 = scmp.ne.s32.totalorder %s111, %s113
      %p120 = scmp.eq.s32.totalorder %s19, 1
      %p121 = por %p119, %p120
      %p122 = scmp.ne.s32.totalorder %s113, %s114
      %p123 = scmp.eq.s32.totalorder %s19, 0
      %p124 = por %p122, %p123
      %p125 = scmp.ne.s32.totalorder %s113, %s114
      %p126 = scmp.eq.s32.totalorder %s20, 1
      %p127 = por %p125, %p126
      %p129 = scmp.ne.s32.totalorder %s114, %s128
      %p130 = scmp.eq.s32.totalorder %s20, 0
      %p131 = por %p129, %p130
      %s132 = ssub.s32 %s14, %s21
      %p133 = scmp.eq.s32.totalorder %s132, 0
      %s135 = sadd.s32 %s134, 1
      %s136 = scalar_select %p133, %s134, %s135
      %p139 = pneg %p133
      %p140 = scmp.eq.s32.totalorder %s14, 1
      %p141 = por %p139, %p140
      %p142 = scmp.ne.s32.totalorder %s134, %s137
      %p143 = scmp.eq.s32.totalorder %s14, 0
      %p144 = por %p142, %p143
      %p145 = scmp.ne.s32.totalorder %s134, %s137
      %p146 = scmp.eq.s32.totalorder %s19, 1
      %p147 = por %p145, %p146
      %p148 = scmp.ne.s32.totalorder %s137, %s138
      %p149 = scmp.eq.s32.totalorder %s19, 0
      %p150 = por %p148, %p149
      %p151 = scmp.ne.s32.totalorder %s137, %s138
      %p152 = scmp.eq.s32.totalorder %s20, 1
      %p153 = por %p151, %p152
      %p155 = scmp.ne.s32.totalorder %s138, %s154
      %p156 = scmp.eq.s32.totalorder %s20, 0
      %p157 = por %p155, %p156
      %p158 = scmp.le.s32.totalorder 1, %s14
      %p159 = scmp.lt.s32.totalorder %s14, 3
      %p160 = pnand %p158, %p159
      %p161 = pneg %p160
      // Predicated region
      $region9: #{nd_linear_forward.3} parent=5 // pred_check
        _
      $region10: #{nd_linear_forward.3} parent=5 // pred_check_branch
        %163 = sbr.rel (%p160) target = $region12
      $region11: #{nd_linear_forward.3} parent=5 // pred_region
        %s164 = ssub.s32 %s14, 1
        // Predicated region
        $region13: #{nd_linear_forward.3} parent=11 // pred_check
          %p165 = pneg %p61
        $region14: #{nd_linear_forward.3} parent=11 // pred_check_branch
          %167 = sbr.rel (%p165) target = $region16
        $region15: #{nd_linear_forward.3} parent=11 // pred_region
          _
        $region16: #{nd_linear_forward.3} parent=11 // pred_fallthru
          _
        // Predicated region
        $region17: #{nd_linear_forward.3} parent=11 // pred_check
          %p168 = pneg %p82
        $region18: #{nd_linear_forward.3} parent=11 // pred_check_branch
          %170 = sbr.rel (%p168) target = $region20
        $region19: #{nd_linear_forward.3} parent=11 // pred_region
          _
        $region20: #{nd_linear_forward.3} parent=11 // pred_fallthru
          _
        // Predicated region
        $region21: #{nd_linear_forward.3} parent=11 // pred_check
          %p171 = pneg %p103
        $region22: #{nd_linear_forward.3} parent=11 // pred_check_branch
          %173 = sbr.rel (%p171) target = $region24
        $region23: #{nd_linear_forward.3} parent=11 // pred_region
          _
        $region24: #{nd_linear_forward.3} parent=11 // pred_fallthru
          _
        // Predicated region
        $region25: #{nd_linear_forward.3} parent=11 // pred_check
          %p174 = pneg %p124
        $region26: #{nd_linear_forward.3} parent=11 // pred_check_branch
          %176 = sbr.rel (%p174) target = $region28
        $region27: #{nd_linear_forward.3} parent=11 // pred_region
          _
        $region28: #{nd_linear_forward.3} parent=11 // pred_fallthru
          _
      $region12: #{nd_linear_forward.3} parent=5 // pred_fallthru
        _
      %p177 = scmp.lt.s32.totalorder %s14, 2
      // Predicated region
      $region29: #{nd_linear_forward.3} parent=5 // pred_check
        %p178 = pneg %p177
      $region30: #{nd_linear_forward.3} parent=5 // pred_check_branch
        %180 = sbr.rel (%p178) target = $region32
      $region31: #{nd_linear_forward.3} parent=5 // pred_region
        // Predicated region
        $region33: #{nd_linear_forward.3} parent=31 // pred_check
          %p181 = pneg %p34
        $region34: #{nd_linear_forward.3} parent=31 // pred_check_branch
          %183 = sbr.rel (%p181) target = $region36
        $region35: #{nd_linear_forward.3} parent=31 // pred_region
          %s184 = smul.u32 8, %s14
          %p185 = scmp.lt.s32.totalorder %s184, 15
          %s186 = scalar_select %p185, %s184, 15
          %s187 = smul.addr %s186, 2
          %s188 = smul.addr %s187, 8
          %s189 = scalar_lea.vmem %s0, %s188
          %s190 = smul.u32 8, %s14
        $region36: #{nd_linear_forward.3} parent=31 // pred_fallthru
          _
      $region32: #{nd_linear_forward.3} parent=5 // pred_fallthru
        _
      %p191 = scmp.le.s32.totalorder 1, %s14
      %p192 = scmp.lt.s32.totalorder %s14, 3
      %p193 = pnand %p191, %p192
      %p194 = pneg %p193
      // Predicated region
      $region37: #{nd_linear_forward.3} parent=5 // pred_check
        _
      $region38: #{nd_linear_forward.3} parent=5 // pred_check_branch
        %196 = sbr.rel (%p193) target = $region40
      $region39: #{nd_linear_forward.3} parent=5 // pred_region
        %s197 = ssub.s32 %s14, 1
        %s198 = smul.u32 8, %s19
        %p199 = scmp.lt.s32.totalorder %s198, 15
        %s200 = scalar_select %p199, %s198, 15
        %s201 = smul.addr %s200, 2
        %s202 = smul.addr %s201, 8
        %s203 = scalar_lea.vmem %s0, %s202
        %p204 = pneg %p40
        %p205 = pneg %p37
        %p206 = pneg %p61
        %p207 = pneg %p58
        %p208 = pneg %p82
        %p209 = pneg %p79
        %p210 = pneg %p103
        %p211 = pneg %p100
        %p212 = pneg %p124
        %p213 = pneg %p121
        %p214 = pneg %p150
        %p215 = pneg %p147
        %s216 = sand.u32 %s137, 1
        %s217 = scalar_lea.sflag [#allocation3], %s216
        %s218 = sand.u32 %s137, 1
        %s219 = smul.addr %s218, 128
        %s220 = scalar_lea.vmem [#allocation2], %s219
        %s221 = smul.u32 8, %s19
        %p222 = scmp.lt.s32.totalorder %s221, 15
        %s223 = scalar_select %p222, %s221, 15
        %s224 = smul.addr %s223, 2
        %s225 = smul.addr %s224, 8
        %s226 = scalar_lea.vmem %s0, %s225
        %s227 = smul.u32 8, %s19
        %s228 = smul.u32 8, %s19
        %v229 = vld [vmem:[%s1] sm:$0xff]
        %v230 = vld [vmem:[%s1 + $0x8] sm:$0xff]
        %v231 = vld [vmem:[%s3] sm:$0xff]
        %v232 = vld [vmem:[%s3 + $0x8] sm:$0xff]
        %v233 = vld [vmem:[%s3 + $0x10] sm:$0xff]
        %v234 = vld [vmem:[%s3 + $0x18] sm:$0xff]
        %v235 = vld [vmem:[%s2] sm:$0xff]
        %v236 = vld [vmem:[%s2 + $0x8] sm:$0xff]
        %238 = vset.pattern.permute.xlu0 0
        %239 = vperm.xlu0 %238, %v235
        %v240 = vpop.permute.xlu0 %239
        %243 = vset.pattern.permute.xlu0 0
        %244 = vperm.xlu0 %243, %v236
        %v245 = vpop.permute.xlu0 %244
        %v247 = vld [vmem:[%s4] sm:$0x1]
        %v249 = vperm.slane %v247, 0
        %v251 = vld [vmem:[%s226] sm:$0xff]
        %v252 = vld [vmem:[%s226 + $0x8] sm:$0xff]
        %vm253 = vcmask 130048
        %v255 = vsel %vm253, %v229, 0
        %v258 = vsel %vm253, %v230, 0
        %260 = vmatpush.msra.mxu0 0.0
        %261 = vmatpush.msra.mxu0 0.0
        %262 = vmatpush.msra.mxu0 0.0
        %263 = vmatpush.msra.mxu0 0.0
        %264 = vmatpush.msra.mxu0 0.0
        %265 = vmatpush.msra.mxu0 0.0
        %266 = vmatpush.msra.mxu0 0.0
        %267 = vmatpush.msra.mxu0 0.0
        %268 = vmatpush.msra.mxu0 0.0
        %269 = vmatpush.msra.mxu0 0.0
        %270 = vmatpush.msra.mxu0 0.0
        %271 = vmatpush.msra.mxu0 0.0
        %272 = vmatpush.msra.mxu0 0.0
        %273 = vmatpush.msra.mxu0 0.0
        %274 = vmatpush.msra.mxu0 %v252
        %275 = vmatpush.msra.mxu0 %v251
        %276 = vmatmul.f32.gmra.mxu0 %v255
        %v277 = vpop.f32.mrf.mxu0
        %v278 = vadd.f32 %v240, %v277
        %279 = vmatmul.f32.gmra.mxu0 %v258
        %v280 = vpop.f32.mrf.mxu0
        %v281 = vadd.f32 %v245, %v280
        %282 = vdwg.mxu0
        %vm283 = vcmask 261120
        %v285 = vsel %vm283, %v278, 0
        %v288 = vsel %vm283, %v281, 0
        %290 = vmatpush.msra.mxu0 0.0
        %291 = vmatpush.msra.mxu0 0.0
        %292 = vmatpush.msra.mxu0 0.0
        %293 = vmatpush.msra.mxu0 0.0
        %294 = vmatpush.msra.mxu0 0.0
        %295 = vmatpush.msra.mxu0 0.0
        %296 = vmatpush.msra.mxu0 0.0
        %297 = vmatpush.msra.mxu0 0.0
        %298 = vmatpush.msra.mxu0 0.0
        %299 = vmatpush.msra.mxu0 0.0
        %300 = vmatpush.msra.mxu0 0.0
        %301 = vmatpush.msra.mxu0 0.0
        %302 = vmatpush.msra.mxu0 %v234
        %303 = vmatpush.msra.mxu0 %v233
        %304 = vmatpush.msra.mxu0 %v232
        %305 = vmatpush.msra.mxu0 %v231
        %306 = vmatmul.f32.gmra.mxu0 %v285
        %v307 = vpop.f32.mrf.mxu0
        %v308 = vadd.f32 %v249, %v307
        %309 = vmatmul.f32.gmra.mxu0 %v288
        %v310 = vpop.f32.mrf.mxu0
        %v311 = vadd.f32 %v249, %v310
        %312 = vdwg.mxu0
        %313 = vst.msk [vmem:[%s220] sm:$0xff] %vm253, %v308
        %314 = vst.msk [vmem:[%s220 + $0x8] sm:$0xff] %vm253, %v311
        %s315 = scalar_lea.vmem %s226, 16
        %v316 = vld [vmem:[%s315] sm:$0xff]
        %v317 = vld [vmem:[%s315 + $0x8] sm:$0xff]
        %318 = vmatpush.msra.mxu0 0.0
        %319 = vmatpush.msra.mxu0 0.0
        %320 = vmatpush.msra.mxu0 0.0
        %321 = vmatpush.msra.mxu0 0.0
        %322 = vmatpush.msra.mxu0 0.0
        %323 = vmatpush.msra.mxu0 0.0
        %324 = vmatpush.msra.mxu0 0.0
        %325 = vmatpush.msra.mxu0 0.0
        %326 = vmatpush.msra.mxu0 0.0
        %327 = vmatpush.msra.mxu0 0.0
        %328 = vmatpush.msra.mxu0 0.0
        %329 = vmatpush.msra.mxu0 0.0
        %330 = vmatpush.msra.mxu0 0.0
        %331 = vmatpush.msra.mxu0 0.0
        %332 = vmatpush.msra.mxu0 %v317
        %333 = vmatpush.msra.mxu0 %v316
        %334 = vmatmul.f32.gmra.mxu0 %v255
        %v335 = vpop.f32.mrf.mxu0
        %v336 = vadd.f32 %v240, %v335
        %337 = vmatmul.f32.gmra.mxu0 %v258
        %v338 = vpop.f32.mrf.mxu0
        %v339 = vadd.f32 %v245, %v338
        %340 = vdwg.mxu0
        %v342 = vsel %vm283, %v336, 0
        %v345 = vsel %vm283, %v339, 0
        %347 = vmatpush.msra.mxu0 0.0
        %348 = vmatpush.msra.mxu0 0.0
        %349 = vmatpush.msra.mxu0 0.0
        %350 = vmatpush.msra.mxu0 0.0
        %351 = vmatpush.msra.mxu0 0.0
        %352 = vmatpush.msra.mxu0 0.0
        %353 = vmatpush.msra.mxu0 0.0
        %354 = vmatpush.msra.mxu0 0.0
        %355 = vmatpush.msra.mxu0 0.0
        %356 = vmatpush.msra.mxu0 0.0
        %357 = vmatpush.msra.mxu0 0.0
        %358 = vmatpush.msra.mxu0 0.0
        %359 = vmatpush.msra.mxu0 %v234
        %360 = vmatpush.msra.mxu0 %v233
        %361 = vmatpush.msra.mxu0 %v232
        %362 = vmatpush.msra.mxu0 %v231
        %363 = vmatmul.f32.gmra.mxu0 %v342
        %v364 = vpop.f32.mrf.mxu0
        %v365 = vadd.f32 %v249, %v364
        %366 = vmatmul.f32.gmra.mxu0 %v345
        %v367 = vpop.f32.mrf.mxu0
        %v368 = vadd.f32 %v249, %v367
        %369 = vdwg.mxu0
        %s370 = scalar_lea.vmem %s220, 16 [#allocation2]
        %371 = vst.msk [vmem:[%s370] sm:$0xff] %vm253, %v365
        %372 = vst.msk [vmem:[%s370 + $0x8] sm:$0xff] %vm253, %v368
        %s373 = scalar_lea.vmem %s226, 32
        %v374 = vld [vmem:[%s373] sm:$0xff]
        %v375 = vld [vmem:[%s373 + $0x8] sm:$0xff]
        %376 = vmatpush.msra.mxu0 0.0
        %377 = vmatpush.msra.mxu0 0.0
        %378 = vmatpush.msra.mxu0 0.0
        %379 = vmatpush.msra.mxu0 0.0
        %380 = vmatpush.msra.mxu0 0.0
        %381 = vmatpush.msra.mxu0 0.0
        %382 = vmatpush.msra.mxu0 0.0
        %383 = vmatpush.msra.mxu0 0.0
        %384 = vmatpush.msra.mxu0 0.0
        %385 = vmatpush.msra.mxu0 0.0
        %386 = vmatpush.msra.mxu0 0.0
        %387 = vmatpush.msra.mxu0 0.0
        %388 = vmatpush.msra.mxu0 0.0
        %389 = vmatpush.msra.mxu0 0.0
        %390 = vmatpush.msra.mxu0 %v375
        %391 = vmatpush.msra.mxu0 %v374
        %392 = vmatmul.f32.gmra.mxu0 %v255
        %v393 = vpop.f32.mrf.mxu0
        %v394 = vadd.f32 %v240, %v393
        %395 = vmatmul.f32.gmra.mxu0 %v258
        %v396 = vpop.f32.mrf.mxu0
        %v397 = vadd.f32 %v245, %v396
        %398 = vdwg.mxu0
        %v400 = vsel %vm283, %v394, 0
        %v403 = vsel %vm283, %v397, 0
        %405 = vmatpush.msra.mxu0 0.0
        %406 = vmatpush.msra.mxu0 0.0
        %407 = vmatpush.msra.mxu0 0.0
        %408 = vmatpush.msra.mxu0 0.0
        %409 = vmatpush.msra.mxu0 0.0
        %410 = vmatpush.msra.mxu0 0.0
        %411 = vmatpush.msra.mxu0 0.0
        %412 = vmatpush.msra.mxu0 0.0
        %413 = vmatpush.msra.mxu0 0.0
        %414 = vmatpush.msra.mxu0 0.0
        %415 = vmatpush.msra.mxu0 0.0
        %416 = vmatpush.msra.mxu0 0.0
        %417 = vmatpush.msra.mxu0 %v234
        %418 = vmatpush.msra.mxu0 %v233
        %419 = vmatpush.msra.mxu0 %v232
        %420 = vmatpush.msra.mxu0 %v231
        %421 = vmatmul.f32.gmra.mxu0 %v400
        %v422 = vpop.f32.mrf.mxu0
        %v423 = vadd.f32 %v249, %v422
        %424 = vmatmul.f32.gmra.mxu0 %v403
        %v425 = vpop.f32.mrf.mxu0
        %v426 = vadd.f32 %v249, %v425
        %427 = vdwg.mxu0
        %s428 = scalar_lea.vmem %s220, 32 [#allocation2]
        %429 = vst.msk [vmem:[%s428] sm:$0xff] %vm253, %v423
        %430 = vst.msk [vmem:[%s428 + $0x8] sm:$0xff] %vm253, %v426
        %s431 = scalar_lea.vmem %s226, 48
        %v432 = vld [vmem:[%s431] sm:$0xff]
        %v433 = vld [vmem:[%s431 + $0x8] sm:$0xff]
        %434 = vmatpush.msra.mxu0 0.0
        %435 = vmatpush.msra.mxu0 0.0
        %436 = vmatpush.msra.mxu0 0.0
        %437 = vmatpush.msra.mxu0 0.0
        %438 = vmatpush.msra.mxu0 0.0
        %439 = vmatpush.msra.mxu0 0.0
        %440 = vmatpush.msra.mxu0 0.0
        %441 = vmatpush.msra.mxu0 0.0
        %442 = vmatpush.msra.mxu0 0.0
        %443 = vmatpush.msra.mxu0 0.0
        %444 = vmatpush.msra.mxu0 0.0
        %445 = vmatpush.msra.mxu0 0.0
        %446 = vmatpush.msra.mxu0 0.0
        %447 = vmatpush.msra.mxu0 0.0
        %448 = vmatpush.msra.mxu0 %v433
        %449 = vmatpush.msra.mxu0 %v432
        %450 = vmatmul.f32.gmra.mxu0 %v255
        %v451 = vpop.f32.mrf.mxu0
        %v452 = vadd.f32 %v240, %v451
        %453 = vmatmul.f32.gmra.mxu0 %v258
        %v454 = vpop.f32.mrf.mxu0
        %v455 = vadd.f32 %v245, %v454
        %456 = vdwg.mxu0
        %v458 = vsel %vm283, %v452, 0
        %v461 = vsel %vm283, %v455, 0
        %463 = vmatpush.msra.mxu0 0.0
        %464 = vmatpush.msra.mxu0 0.0
        %465 = vmatpush.msra.mxu0 0.0
        %466 = vmatpush.msra.mxu0 0.0
        %467 = vmatpush.msra.mxu0 0.0
        %468 = vmatpush.msra.mxu0 0.0
        %469 = vmatpush.msra.mxu0 0.0
        %470 = vmatpush.msra.mxu0 0.0
        %471 = vmatpush.msra.mxu0 0.0
        %472 = vmatpush.msra.mxu0 0.0
        %473 = vmatpush.msra.mxu0 0.0
        %474 = vmatpush.msra.mxu0 0.0
        %475 = vmatpush.msra.mxu0 %v234
        %476 = vmatpush.msra.mxu0 %v233
        %477 = vmatpush.msra.mxu0 %v232
        %478 = vmatpush.msra.mxu0 %v231
        %479 = vmatmul.f32.gmra.mxu0 %v458
        %v480 = vpop.f32.mrf.mxu0
        %v481 = vadd.f32 %v249, %v480
        %482 = vmatmul.f32.gmra.mxu0 %v461
        %v483 = vpop.f32.mrf.mxu0
        %v484 = vadd.f32 %v249, %v483
        %485 = vdwg.mxu0
        %s486 = scalar_lea.vmem %s220, 48 [#allocation2]
        %487 = vst.msk [vmem:[%s486] sm:$0xff] %vm253, %v481
        %488 = vst.msk [vmem:[%s486 + $0x8] sm:$0xff] %vm253, %v484
        %s489 = scalar_lea.vmem %s226, 64
        %v490 = vld [vmem:[%s489] sm:$0xff]
        %v491 = vld [vmem:[%s489 + $0x8] sm:$0xff]
        %492 = vmatpush.msra.mxu0 0.0
        %493 = vmatpush.msra.mxu0 0.0
        %494 = vmatpush.msra.mxu0 0.0
        %495 = vmatpush.msra.mxu0 0.0
        %496 = vmatpush.msra.mxu0 0.0
        %497 = vmatpush.msra.mxu0 0.0
        %498 = vmatpush.msra.mxu0 0.0
        %499 = vmatpush.msra.mxu0 0.0
        %500 = vmatpush.msra.mxu0 0.0
        %501 = vmatpush.msra.mxu0 0.0
        %502 = vmatpush.msra.mxu0 0.0
        %503 = vmatpush.msra.mxu0 0.0
        %504 = vmatpush.msra.mxu0 0.0
        %505 = vmatpush.msra.mxu0 0.0
        %506 = vmatpush.msra.mxu0 %v491
        %507 = vmatpush.msra.mxu0 %v490
        %508 = vmatmul.f32.gmra.mxu0 %v255
        %v509 = vpop.f32.mrf.mxu0
        %v510 = vadd.f32 %v240, %v509
        %511 = vmatmul.f32.gmra.mxu0 %v258
        %v512 = vpop.f32.mrf.mxu0
        %v513 = vadd.f32 %v245, %v512
        %514 = vdwg.mxu0
        %v516 = vsel %vm283, %v510, 0
        %v519 = vsel %vm283, %v513, 0
        %521 = vmatpush.msra.mxu0 0.0
        %522 = vmatpush.msra.mxu0 0.0
        %523 = vmatpush.msra.mxu0 0.0
        %524 = vmatpush.msra.mxu0 0.0
        %525 = vmatpush.msra.mxu0 0.0
        %526 = vmatpush.msra.mxu0 0.0
        %527 = vmatpush.msra.mxu0 0.0
        %528 = vmatpush.msra.mxu0 0.0
        %529 = vmatpush.msra.mxu0 0.0
        %530 = vmatpush.msra.mxu0 0.0
        %531 = vmatpush.msra.mxu0 0.0
        %532 = vmatpush.msra.mxu0 0.0
        %533 = vmatpush.msra.mxu0 %v234
        %534 = vmatpush.msra.mxu0 %v233
        %535 = vmatpush.msra.mxu0 %v232
        %536 = vmatpush.msra.mxu0 %v231
        %537 = vmatmul.f32.gmra.mxu0 %v516
        %v538 = vpop.f32.mrf.mxu0
        %v539 = vadd.f32 %v249, %v538
        %540 = vmatmul.f32.gmra.mxu0 %v519
        %v541 = vpop.f32.mrf.mxu0
        %v542 = vadd.f32 %v249, %v541
        %543 = vdwg.mxu0
        %s544 = scalar_lea.vmem %s220, 64 [#allocation2]
        %545 = vst.msk [vmem:[%s544] sm:$0xff] %vm253, %v539
        %546 = vst.msk [vmem:[%s544 + $0x8] sm:$0xff] %vm253, %v542
        %s547 = scalar_lea.vmem %s226, 80
        %v548 = vld [vmem:[%s547] sm:$0xff]
        %v549 = vld [vmem:[%s547 + $0x8] sm:$0xff]
        %550 = vmatpush.msra.mxu0 0.0
        %551 = vmatpush.msra.mxu0 0.0
        %552 = vmatpush.msra.mxu0 0.0
        %553 = vmatpush.msra.mxu0 0.0
        %554 = vmatpush.msra.mxu0 0.0
        %555 = vmatpush.msra.mxu0 0.0
        %556 = vmatpush.msra.mxu0 0.0
        %557 = vmatpush.msra.mxu0 0.0
        %558 = vmatpush.msra.mxu0 0.0
        %559 = vmatpush.msra.mxu0 0.0
        %560 = vmatpush.msra.mxu0 0.0
        %561 = vmatpush.msra.mxu0 0.0
        %562 = vmatpush.msra.mxu0 0.0
        %563 = vmatpush.msra.mxu0 0.0
        %564 = vmatpush.msra.mxu0 %v549
        %565 = vmatpush.msra.mxu0 %v548
        %566 = vmatmul.f32.gmra.mxu0 %v255
        %v567 = vpop.f32.mrf.mxu0
        %v568 = vadd.f32 %v240, %v567
        %569 = vmatmul.f32.gmra.mxu0 %v258
        %v570 = vpop.f32.mrf.mxu0
        %v571 = vadd.f32 %v245, %v570
        %572 = vdwg.mxu0
        %v574 = vsel %vm283, %v568, 0
        %v577 = vsel %vm283, %v571, 0
        %579 = vmatpush.msra.mxu0 0.0
        %580 = vmatpush.msra.mxu0 0.0
        %581 = vmatpush.msra.mxu0 0.0
        %582 = vmatpush.msra.mxu0 0.0
        %583 = vmatpush.msra.mxu0 0.0
        %584 = vmatpush.msra.mxu0 0.0
        %585 = vmatpush.msra.mxu0 0.0
        %586 = vmatpush.msra.mxu0 0.0
        %587 = vmatpush.msra.mxu0 0.0
        %588 = vmatpush.msra.mxu0 0.0
        %589 = vmatpush.msra.mxu0 0.0
        %590 = vmatpush.msra.mxu0 0.0
        %591 = vmatpush.msra.mxu0 %v234
        %592 = vmatpush.msra.mxu0 %v233
        %593 = vmatpush.msra.mxu0 %v232
        %594 = vmatpush.msra.mxu0 %v231
        %595 = vmatmul.f32.gmra.mxu0 %v574
        %v596 = vpop.f32.mrf.mxu0
        %v597 = vadd.f32 %v249, %v596
        %598 = vmatmul.f32.gmra.mxu0 %v577
        %v599 = vpop.f32.mrf.mxu0
        %v600 = vadd.f32 %v249, %v599
        %601 = vdwg.mxu0
        %s602 = scalar_lea.vmem %s220, 80 [#allocation2]
        %603 = vst.msk [vmem:[%s602] sm:$0xff] %vm253, %v597
        %604 = vst.msk [vmem:[%s602 + $0x8] sm:$0xff] %vm253, %v600
        %s605 = scalar_lea.vmem %s226, 96
        %v606 = vld [vmem:[%s605] sm:$0xff]
        %v607 = vld [vmem:[%s605 + $0x8] sm:$0xff]
        %608 = vmatpush.msra.mxu0 0.0
        %609 = vmatpush.msra.mxu0 0.0
        %610 = vmatpush.msra.mxu0 0.0
        %611 = vmatpush.msra.mxu0 0.0
        %612 = vmatpush.msra.mxu0 0.0
        %613 = vmatpush.msra.mxu0 0.0
        %614 = vmatpush.msra.mxu0 0.0
        %615 = vmatpush.msra.mxu0 0.0
        %616 = vmatpush.msra.mxu0 0.0
        %617 = vmatpush.msra.mxu0 0.0
        %618 = vmatpush.msra.mxu0 0.0
        %619 = vmatpush.msra.mxu0 0.0
        %620 = vmatpush.msra.mxu0 0.0
        %621 = vmatpush.msra.mxu0 0.0
        %622 = vmatpush.msra.mxu0 %v607
        %623 = vmatpush.msra.mxu0 %v606
        %624 = vmatmul.f32.gmra.mxu0 %v255
        %v625 = vpop.f32.mrf.mxu0
        %v626 = vadd.f32 %v240, %v625
        %627 = vmatmul.f32.gmra.mxu0 %v258
        %v628 = vpop.f32.mrf.mxu0
        %v629 = vadd.f32 %v245, %v628
        %630 = vdwg.mxu0
        %v632 = vsel %vm283, %v626, 0
        %v635 = vsel %vm283, %v629, 0
        %637 = vmatpush.msra.mxu0 0.0
        %638 = vmatpush.msra.mxu0 0.0
        %639 = vmatpush.msra.mxu0 0.0
        %640 = vmatpush.msra.mxu0 0.0
        %641 = vmatpush.msra.mxu0 0.0
        %642 = vmatpush.msra.mxu0 0.0
        %643 = vmatpush.msra.mxu0 0.0
        %644 = vmatpush.msra.mxu0 0.0
        %645 = vmatpush.msra.mxu0 0.0
        %646 = vmatpush.msra.mxu0 0.0
        %647 = vmatpush.msra.mxu0 0.0
        %648 = vmatpush.msra.mxu0 0.0
        %649 = vmatpush.msra.mxu0 %v234
        %650 = vmatpush.msra.mxu0 %v233
        %651 = vmatpush.msra.mxu0 %v232
        %652 = vmatpush.msra.mxu0 %v231
        %653 = vmatmul.f32.gmra.mxu0 %v632
        %v654 = vpop.f32.mrf.mxu0
        %v655 = vadd.f32 %v249, %v654
        %656 = vmatmul.f32.gmra.mxu0 %v635
        %v657 = vpop.f32.mrf.mxu0
        %v658 = vadd.f32 %v249, %v657
        %659 = vdwg.mxu0
        %s660 = scalar_lea.vmem %s220, 96 [#allocation2]
        %661 = vst.msk [vmem:[%s660] sm:$0xff] %vm253, %v655
        %662 = vst.msk [vmem:[%s660 + $0x8] sm:$0xff] %vm253, %v658
        %s663 = scalar_lea.vmem %s226, 112
        %v664 = vld [vmem:[%s663] sm:$0xff]
        %v665 = vld [vmem:[%s663 + $0x8] sm:$0xff]
        %666 = vmatpush.msra.mxu0 0.0
        %667 = vmatpush.msra.mxu0 0.0
        %668 = vmatpush.msra.mxu0 0.0
        %669 = vmatpush.msra.mxu0 0.0
        %670 = vmatpush.msra.mxu0 0.0
        %671 = vmatpush.msra.mxu0 0.0
        %672 = vmatpush.msra.mxu0 0.0
        %673 = vmatpush.msra.mxu0 0.0
        %674 = vmatpush.msra.mxu0 0.0
        %675 = vmatpush.msra.mxu0 0.0
        %676 = vmatpush.msra.mxu0 0.0
        %677 = vmatpush.msra.mxu0 0.0
        %678 = vmatpush.msra.mxu0 0.0
        %679 = vmatpush.msra.mxu0 0.0
        %680 = vmatpush.msra.mxu0 %v665
        %681 = vmatpush.msra.mxu0 %v664
        %682 = vmatmul.f32.gmra.mxu0 %v255
        %v683 = vpop.f32.mrf.mxu0
        %v684 = vadd.f32 %v240, %v683
        %685 = vmatmul.f32.gmra.mxu0 %v258
        %v686 = vpop.f32.mrf.mxu0
        %v687 = vadd.f32 %v245, %v686
        %688 = vdwg.mxu0
        %v690 = vsel %vm283, %v684, 0
        %v693 = vsel %vm283, %v687, 0
        %695 = vmatpush.msra.mxu0 0.0
        %696 = vmatpush.msra.mxu0 0.0
        %697 = vmatpush.msra.mxu0 0.0
        %698 = vmatpush.msra.mxu0 0.0
        %699 = vmatpush.msra.mxu0 0.0
        %700 = vmatpush.msra.mxu0 0.0
        %701 = vmatpush.msra.mxu0 0.0
        %702 = vmatpush.msra.mxu0 0.0
        %703 = vmatpush.msra.mxu0 0.0
        %704 = vmatpush.msra.mxu0 0.0
        %705 = vmatpush.msra.mxu0 0.0
        %706 = vmatpush.msra.mxu0 0.0
        %707 = vmatpush.msra.mxu0 %v234
        %708 = vmatpush.msra.mxu0 %v233
        %709 = vmatpush.msra.mxu0 %v232
        %710 = vmatpush.msra.mxu0 %v231
        %711 = vmatmul.f32.gmra.mxu0 %v690
        %v712 = vpop.f32.mrf.mxu0
        %v713 = vadd.f32 %v249, %v712
        %714 = vmatmul.f32.gmra.mxu0 %v693
        %v715 = vpop.f32.mrf.mxu0
        %v716 = vadd.f32 %v249, %v715
        %717 = vdwg.mxu0
        %s718 = scalar_lea.vmem %s220, 112 [#allocation2]
        %719 = vst.msk [vmem:[%s718] sm:$0xff] %vm253, %v713
        %720 = vst.msk [vmem:[%s718 + $0x8] sm:$0xff] %vm253, %v716
        %s721 = sand.u32 %s137, 1
        %s722 = scalar_lea.sflag [#allocation3], %s721
        %s723 = sand.u32 %s137, 1
        %s724 = smul.addr %s723, 128
        %s725 = scalar_lea.vmem [#allocation2], %s724
        // Predicated region
        $region41: #{nd_linear_forward.3} parent=39 // pred_check
          %p726 = pneg %p147
        $region42: #{nd_linear_forward.3} parent=39 // pred_check_branch
          %728 = sbr.rel (%p726) target = $region44
        $region43: #{nd_linear_forward.3} parent=39 // pred_region
          %s729 = smul.u32 8, %s19
          %731 = vsyncadd %s722, 0
          %s732 = smul.addr %s729, 2
          %s733 = smul.addr %s732, 8
          %s734 = scalar_lea.hbm %s5, %s733
          %s735 = sshll.u32 %s725, 4
          %s736 = int_to_ptr.vmem [resolvable:$true] %s735
          %s737 = sshll.u32 %s734, 4
          %s738 = int_to_ptr.hbm [resolvable:$true] %s737
          %743 = dma.vmem_to_hbm [thread:$0]  %s736, 2048, %s738, %s722, 128, 128, 8
        $region44: #{nd_linear_forward.3} parent=39 // pred_fallthru
          _
      $region40: #{nd_linear_forward.3} parent=5 // pred_fallthru
        _
      %p744 = scmp.le.s32.totalorder 2, %s14
      // Predicated region
      $region45: #{nd_linear_forward.3} parent=5 // pred_check
        %p745 = pneg %p744
      $region46: #{nd_linear_forward.3} parent=5 // pred_check_branch
        %747 = sbr.rel (%p745) target = $region48
      $region47: #{nd_linear_forward.3} parent=5 // pred_region
        %s748 = ssub.s32 %s14, 2
        // Predicated region
        $region49: #{nd_linear_forward.3} parent=47 // pred_check
          %p749 = pneg %p153
        $region50: #{nd_linear_forward.3} parent=47 // pred_check_branch
          %751 = sbr.rel (%p749) target = $region52
        $region51: #{nd_linear_forward.3} parent=47 // pred_region
          %s752 = sand.u32 %s138, 1
          %s753 = scalar_lea.sflag [#allocation3], %s752
          %s754 = sand.u32 %s138, 1
          %s755 = smul.addr %s754, 128
          %s756 = scalar_lea.vmem [#allocation2], %s755
          %758 = dma.done %s753, 2048
        $region52: #{nd_linear_forward.3} parent=47 // pred_fallthru
          _
      $region48: #{nd_linear_forward.3} parent=5 // pred_fallthru
        _
    $region6: #{nd_linear_forward.3} parent=1 // loop_footer
      %s18 = sadd.s32 1, %s14
    $region7: #{nd_linear_forward.3} parent=1 // loop_footer_branch
      %13 = sbr.rel target = $region3
    $region8: #{nd_linear_forward.3} parent=1 // loop_exit
      _
    %759 = vsyncpa [#allocation3], 1
    %s760 = scalar_lea.sflag [#allocation3], 1
    %761 = vsyncpa %s760, 1

</llo_original>
